<compile_context>
chip_gen: v6e
topology: v6e:2x2x1
jax: 0.10.0
libtpu: 0.0.40
codegen_flags: <defaults>
</compile_context>

<pallas_src>
import functools

import jax
import jax.numpy as jnp
from jax.experimental import pallas as pl
from jax.experimental.pallas import tpu as pltpu


# ----------------------------- Fused forward kernel -----------------------------
def text_encoder_kernel(len_ref,                      # SMEM (B,) int32 (scalar prefetch)
                        x_ref,                        # (B*T, C)
                        cw_ref, cb_ref,               # (NCONV, K*C, C), (NCONV, 1, C)
                        wih_ref, whh_ref, lb_ref,     # (C, 8H), (H, 8H), (1, 8H)
                        pw_ref, pb_ref,               # (C, C), (1, C)
                        o_ref,                        # (B*T, C)
                        *, B, T, C, H, K, pad, NCONV):
    x = x_ref[...]                                    # (B*T, C)
    zpad = jnp.zeros((pad, C), jnp.float32)

    # ---- NCONV x (Conv1d 'same' + folded eval-BatchNorm + ReLU), im2col matmul ----
    # Windows are built per batch element (no cross-batch leakage) fully in
    # registers; pad rows are zeros concatenated in-register (no VMEM scratch).
    for l in range(NCONV):
        wins = []
        for b in range(B):
            xb = x[b * T:(b + 1) * T, :]                                      # (T, C)
            xpad = jnp.concatenate([zpad, xb, zpad], axis=0)                  # (T+2p, C)
            wins.append(jnp.concatenate([xpad[k:k + T, :] for k in range(K)],
                                        axis=-1))                            # (T, K*C)
        win = jnp.concatenate(wins, axis=0)                                   # (B*T, K*C)
        y = jnp.dot(win, cw_ref[l], preferred_element_type=jnp.float32) + cb_ref[l]
        x = jnp.maximum(y, 0.0)                        # ReLU (dropout in eval = identity)

    # ------------------- BiLSTM with packed-sequence masking --------------------
    # Input projection hoisted out of the recurrence; both directions in one
    # matmul ([wih_f|wih_b] lane-concatenated, gate order (i,f,o,g)).
    gx = jnp.dot(x, wih_ref[...], preferred_element_type=jnp.float32) + lb_ref[...]  # (B*T, 8H)
    whh = whh_ref[...]                                                                # (H, 8H)

    # Per-row valid lengths: rows 0..B-1 = forward dir, rows B..2B-1 = backward dir.
    L_rows = jnp.concatenate(
        [jnp.full((1, 1), len_ref[b], jnp.int32) for b in range(B)] * 2, axis=0)      # (2B, 1)

    h = jnp.zeros((2 * B, H), jnp.float32)
    c = jnp.zeros((2 * B, H), jnp.float32)
    fwd_out = [None] * T
    bwd_out = [None] * T

    # TODO(synk): at production T (100+) switch to lax.fori_loop(unroll=4-8) with a
    # (B*T, 2H) VMEM scratch for outputs instead of the fully-unrolled assembly.
    for s in range(T):
        tf = s
        tb = T - 1 - s
        # Gather the fwd rows (time tf) and bwd rows (time tb) of gx for all batches.
        gx_step = jnp.concatenate(
            [gx[b * T + tf:b * T + tf + 1, :] for b in range(B)] +
            [gx[b * T + tb:b * T + tb + 1, :] for b in range(B)], axis=0)      # (2B, 8H)

        # ONE recurrent matmul for both directions: (2B,H) @ (H,8H).
        gates_all = gx_step + jnp.dot(h, whh, preferred_element_type=jnp.float32)
        gates = jnp.concatenate([gates_all[:B, :4 * H],      # fwd gates
                                 gates_all[B:, 4 * H:]],     # bwd gates
                                axis=0)                       # (2B, 4H), order (i,f,o,g)

        sg = jax.nn.sigmoid(gates[:, :3 * H])                 # i | f | o  (one EUP pass)
        g_g = jnp.tanh(gates[:, 3 * H:])                      # g
        i_g = sg[:, :H]
        f_g = sg[:, H:2 * H]
        o_g = sg[:, 2 * H:3 * H]
        c_new = f_g * c + i_g * g_g
        h_new = o_g * jnp.tanh(c_new)

        # Packed-sequence masking: freeze state / zero outputs past each length.
        t_rows = jnp.concatenate([jnp.full((B, 1), tf, jnp.int32),
                                  jnp.full((B, 1), tb, jnp.int32)], axis=0)    # (2B, 1)
        valid = L_rows > t_rows
        h = jnp.where(valid, h_new, h)
        c = jnp.where(valid, c_new, c)
        out_step = jnp.where(valid, h_new, 0.0)
        fwd_out[tf] = out_step[:B, :]                          # (B, H)
        bwd_out[tb] = out_step[B:, :]                          # (B, H)

    # Assemble (B*T, 2H): row b*T + t = [fwd_out[t][b] | bwd_out[t][b]].
    per_batch = []
    for b in range(B):
        fb = jnp.concatenate([fwd_out[t][b:b + 1, :] for t in range(T)], axis=0)   # (T, H)
        bb = jnp.concatenate([bwd_out[t][b:b + 1, :] for t in range(T)], axis=0)   # (T, H)
        per_batch.append(jnp.concatenate([fb, bb], axis=-1))                       # (T, 2H)
    lstm_out = jnp.concatenate(per_batch, axis=0)                                  # (B*T, 2H)

    # ------------------------ Projection (Linear + ReLU) ------------------------
    y = jnp.dot(lstm_out, pw_ref[...], preferred_element_type=jnp.float32) + pb_ref[...]
    o_ref[...] = jnp.maximum(y, 0.0)                   # single full store


# ------------------------------- Host-side wrapper -------------------------------
def text_encoder_forward(x_bct, input_lengths, params):
    """x_bct: [B, C, T] (PyTorch layout). Returns [B, T, C]."""
    B, C, T = x_bct.shape
    H = C // 2
    convs = params["convs"]
    n_conv = len(convs)
    K = convs[0]["w"].shape[0]
    pad = (K - 1) // 2

    # Fold conv bias + eval-mode BatchNorm into the conv weights; stack layers.
    cw = jnp.stack([(l["w"] * l["scale"][0][None, None, :]).reshape(K * C, C)
                    for l in convs])                                    # (n_conv, K*C, C)
    cb = jnp.stack([l["b"] * l["scale"] + l["shift"] for l in convs])   # (n_conv, 1, C)

    # Permute LSTM gate columns (i,f,g,o) -> (i,f,o,g) and fuse fwd|bwd lane-wise.
    lstm = params["lstm"]

    def perm(w):
        return jnp.concatenate([w[..., :2 * H], w[..., 3 * H:], w[..., 2 * H:3 * H]],
                               axis=-1)

    wih = jnp.concatenate([perm(lstm["wih_f"]), perm(lstm["wih_b"])], axis=-1)  # (C, 8H)
    whh = jnp.concatenate([perm(lstm["whh_f"]), perm(lstm["whh_b"])], axis=-1)  # (H, 8H)
    lb = jnp.concatenate([perm(lstm["b_f"]), perm(lstm["b_b"])], axis=-1)       # (1, 8H)

    # Flatten batch*time so the whole batch is one kernel step (single-TC parts
    # pay no per-element grid overhead; matmuls get B*T rows).
    x_flat = jnp.transpose(x_bct, (0, 2, 1)).reshape(B * T, C)

    kernel = functools.partial(text_encoder_kernel,
                               B=B, T=T, C=C, H=H, K=K, pad=pad, NCONV=n_conv)
    full2 = lambda i, lens: (0, 0)
    full3 = lambda i, lens: (0, 0, 0)

    grid_spec = pltpu.PrefetchScalarGridSpec(
        num_scalar_prefetch=1,                        # input_lengths -> SMEM
        grid=(1,),                                    # batch grid collapsed
        in_specs=[
            pl.BlockSpec((B * T, C), full2),          # x (flattened)
            pl.BlockSpec((n_conv, K * C, C), full3),  # stacked folded conv weights
            pl.BlockSpec((n_conv, 1, C), full3),      # stacked folded conv biases
            pl.BlockSpec((C, 8 * H), full2),          # wih  (fwd|bwd, permuted gates)
            pl.BlockSpec((H, 8 * H), full2),          # whh  (fwd|bwd, permuted gates)
            pl.BlockSpec((1, 8 * H), full2),          # lstm bias (b_ih + b_hh)
            pl.BlockSpec((C, C), full2),              # projection weight
            pl.BlockSpec((1, C), full2),              # projection bias
        ],
        out_specs=pl.BlockSpec((B * T, C), full2),
    )

    out_flat = pl.pallas_call(
        kernel,
        out_shape=jax.ShapeDtypeStruct((B * T, C), jnp.float32),
        grid_spec=grid_spec,
        compiler_params=pltpu.CompilerParams(dimension_semantics=("arbitrary",)),
    )(input_lengths.astype(jnp.int32), x_flat, cw, cb, wih, whh, lb,
      params["proj_w"], params["proj_b"])

    return out_flat.reshape(B, T, C)


# ------------------------------ Pure-JAX reference -------------------------------
def reference_forward(x_bct, lengths, params):
    x = jnp.transpose(x_bct, (0, 2, 1))
    B, T, C = x.shape
    H = C // 2
    for layer in params["convs"]:
        K = layer["w"].shape[0]
        pad = (K - 1) // 2
        xp = jnp.pad(x, ((0, 0), (pad, pad), (0, 0)))
        y = jnp.zeros((B, T, C), jnp.float32)
        for k in range(K):
            y = y + jnp.einsum("btc,cd->btd", xp[:, k:k + T, :], layer["w"][k])
        y = y + layer["b"]
        y = y * layer["scale"] + layer["shift"]
        x = jnp.maximum(y, 0.0)

    lp = params["lstm"]

    def run_dir(wih, whh, bias, reverse):
        hs = jnp.zeros((B, H)); cs = jnp.zeros((B, H))
        outs = [None] * T
        times = range(T - 1, -1, -1) if reverse else range(T)
        for t in times:
            gates = x[:, t, :] @ wih + hs @ whh + bias
            i = jax.nn.sigmoid(gates[:, :H]); f = jax.nn.sigmoid(gates[:, H:2 * H])
            g = jnp.tanh(gates[:, 2 * H:3 * H]); o = jax.nn.sigmoid(gates[:, 3 * H:])
            c_new = f * cs + i * g
            h_new = o * jnp.tanh(c_new)
            mask = (lengths[:, None].astype(jnp.float32) > t).astype(jnp.float32)
            hs = mask * h_new + (1 - mask) * hs
            cs = mask * c_new + (1 - mask) * cs
            outs[t] = mask * h_new
        return jnp.stack(outs, axis=1)

    lstm_out = jnp.concatenate(
        [run_dir(lp["wih_f"], lp["whh_f"], lp["b_f"], False),
         run_dir(lp["wih_b"], lp["whh_b"], lp["b_b"], True)], axis=-1)
    y = jnp.einsum("btc,cd->btd", lstm_out, params["proj_w"]) + params["proj_b"]
    return jnp.maximum(y, 0.0)


# ------------------------------------- Main --------------------------------------
if __name__ == "__main__":
    # hparams (small): encoder_embedding_dim=32, n_convolutions=3, kernel_size=5,
    # hidden_activation='relu', text_encoder_dropout (inactive in eval).
    B, C, T, K = 2, 32, 8, 5
    H = C // 2
    n_conv = 3
    bn_eps = 1e-5

    key = jax.random.PRNGKey(0)
    keys = iter(jax.random.split(key, 32))

    convs = []
    for _ in range(n_conv):
        w = 0.1 * jax.random.normal(next(keys), (K, C, C), jnp.float32)   # [K, Cin, Cout]
        b = 0.1 * jax.random.normal(next(keys), (1, C), jnp.float32)
        gamma = 1.0 + 0.1 * jax.random.normal(next(keys), (1, C), jnp.float32)
        beta = 0.1 * jax.random.normal(next(keys), (1, C), jnp.float32)
        # eval-mode BatchNorm with fresh running stats (mean=0, var=1), folded:
        # TODO(synk): if real running stats are loaded, fold scale=gamma/sqrt(var+eps),
        #             shift=beta-mean*scale here instead.
        scale = gamma / jnp.sqrt(1.0 + bn_eps)
        shift = beta
        convs.append({"w": w, "b": b, "scale": scale, "shift": shift})

    lstm = {
        "wih_f": 0.1 * jax.random.normal(next(keys), (C, 4 * H), jnp.float32),
        "whh_f": 0.1 * jax.random.normal(next(keys), (H, 4 * H), jnp.float32),
        "b_f": 0.1 * jax.random.normal(next(keys), (1, 4 * H), jnp.float32),  # b_ih + b_hh
        "wih_b": 0.1 * jax.random.normal(next(keys), (C, 4 * H), jnp.float32),
        "whh_b": 0.1 * jax.random.normal(next(keys), (H, 4 * H), jnp.float32),
        "b_b": 0.1 * jax.random.normal(next(keys), (1, 4 * H), jnp.float32),
    }

    params = {
        "convs": convs,
        "lstm": lstm,
        "proj_w": 0.1 * jax.random.normal(next(keys), (C, C), jnp.float32),
        "proj_b": 0.1 * jax.random.normal(next(keys), (1, C), jnp.float32),
    }

    x = jax.random.normal(next(keys), (B, C, T), jnp.float32)   # PyTorch NCT input
    input_lengths = jnp.array([T, 5], dtype=jnp.int32)          # max length == T

    out = jax.block_until_ready(text_encoder_forward(x, input_lengths, params))
    ref = jax.block_until_ready(reference_forward(x, input_lengths, params))

    assert out.shape == (B, T, C), out.shape
    assert jnp.allclose(out, ref, atol=1e-2, rtol=1e-2), float(jnp.max(jnp.abs(out - ref)))

    print("KERNEL_OK")
</pallas_src>

<mosaic_0001>
module attributes {stable_mosaic.version = 11 : i64} {
  func.func @text_encoder_kernel(%arg0: i32, %arg1: memref<2xi32, #tpu.memory_space<smem>>, %arg2: memref<16x32xf32, #tpu.memory_space<vmem>>, %arg3: memref<3x160x32xf32, #tpu.memory_space<vmem>>, %arg4: memref<3x1x32xf32, #tpu.memory_space<vmem>>, %arg5: memref<32x128xf32, #tpu.memory_space<vmem>>, %arg6: memref<16x128xf32, #tpu.memory_space<vmem>>, %arg7: memref<1x128xf32, #tpu.memory_space<vmem>>, %arg8: memref<32x32xf32, #tpu.memory_space<vmem>>, %arg9: memref<1x32xf32, #tpu.memory_space<vmem>>, %arg10: memref<16x32xf32, #tpu.memory_space<vmem>>) attributes {dimension_semantics = [#tpu.dimension_semantics<arbitrary>], iteration_bounds = array<i64: 1>, scalar_prefetch = 1 : i64, scratch_operands = 0 : i64, tpu.core_type = #tpu.core_type<tc>, window_params = [{pipeline_mode = #tpu.pipeline_mode<synchronous>, transform_indices = @transform_0, window_bounds = array<i64: 16, 32>}, {pipeline_mode = #tpu.pipeline_mode<synchronous>, transform_indices = @transform_1, window_bounds = array<i64: 3, 160, 32>}, {pipeline_mode = #tpu.pipeline_mode<synchronous>, transform_indices = @transform_2, window_bounds = array<i64: 3, 1, 32>}, {pipeline_mode = #tpu.pipeline_mode<synchronous>, transform_indices = @transform_3, window_bounds = array<i64: 32, 128>}, {pipeline_mode = #tpu.pipeline_mode<synchronous>, transform_indices = @transform_4, window_bounds = array<i64: 16, 128>}, {pipeline_mode = #tpu.pipeline_mode<synchronous>, transform_indices = @transform_5, window_bounds = array<i64: 1, 128>}, {pipeline_mode = #tpu.pipeline_mode<synchronous>, transform_indices = @transform_6, window_bounds = array<i64: 32, 32>}, {pipeline_mode = #tpu.pipeline_mode<synchronous>, transform_indices = @transform_7, window_bounds = array<i64: 1, 32>}, {pipeline_mode = #tpu.pipeline_mode<synchronous>, transform_indices = @transform_8, window_bounds = array<i64: 16, 32>}]} {
    %c0 = arith.constant 0 : index
    %c0_0 = arith.constant 0 : index
    %0 = vector.load %arg2[%c0, %c0_0] : memref<16x32xf32, #tpu.memory_space<vmem>>, vector<16x32xf32>
    %cst = arith.constant 0.000000e+00 : f32
    %1 = vector.broadcast %cst : f32 to vector<2x32xf32>
    %2 = vector.extract_strided_slice %0 {offsets = [0, 0], sizes = [8, 32], strides = [1, 1]} : vector<16x32xf32> to vector<8x32xf32>
    %3 = tpu.concatenate %1, %2, %1 in 0 : vector<2x32xf32>, vector<8x32xf32>, vector<2x32xf32> -> vector<12x32xf32>
    %4 = vector.extract_strided_slice %3 {offsets = [0, 0], sizes = [8, 32], strides = [1, 1]} : vector<12x32xf32> to vector<8x32xf32>
    %5 = vector.extract_strided_slice %3 {offsets = [1, 0], sizes = [8, 32], strides = [1, 1]} : vector<12x32xf32> to vector<8x32xf32>
    %6 = vector.extract_strided_slice %3 {offsets = [2, 0], sizes = [8, 32], strides = [1, 1]} : vector<12x32xf32> to vector<8x32xf32>
    %7 = vector.extract_strided_slice %3 {offsets = [3, 0], sizes = [8, 32], strides = [1, 1]} : vector<12x32xf32> to vector<8x32xf32>
    %8 = vector.extract_strided_slice %3 {offsets = [4, 0], sizes = [8, 32], strides = [1, 1]} : vector<12x32xf32> to vector<8x32xf32>
    %9 = tpu.concatenate %4, %5, %6, %7, %8 in 1 : vector<8x32xf32>, vector<8x32xf32>, vector<8x32xf32>, vector<8x32xf32>, vector<8x32xf32> -> vector<8x160xf32>
    %10 = vector.extract_strided_slice %0 {offsets = [8, 0], sizes = [8, 32], strides = [1, 1]} : vector<16x32xf32> to vector<8x32xf32>
    %11 = tpu.concatenate %1, %10, %1 in 0 : vector<2x32xf32>, vector<8x32xf32>, vector<2x32xf32> -> vector<12x32xf32>
    %12 = vector.extract_strided_slice %11 {offsets = [0, 0], sizes = [8, 32], strides = [1, 1]} : vector<12x32xf32> to vector<8x32xf32>
    %13 = vector.extract_strided_slice %11 {offsets = [1, 0], sizes = [8, 32], strides = [1, 1]} : vector<12x32xf32> to vector<8x32xf32>
    %14 = vector.extract_strided_slice %11 {offsets = [2, 0], sizes = [8, 32], strides = [1, 1]} : vector<12x32xf32> to vector<8x32xf32>
    %15 = vector.extract_strided_slice %11 {offsets = [3, 0], sizes = [8, 32], strides = [1, 1]} : vector<12x32xf32> to vector<8x32xf32>
    %16 = vector.extract_strided_slice %11 {offsets = [4, 0], sizes = [8, 32], strides = [1, 1]} : vector<12x32xf32> to vector<8x32xf32>
    %17 = tpu.concatenate %12, %13, %14, %15, %16 in 1 : vector<8x32xf32>, vector<8x32xf32>, vector<8x32xf32>, vector<8x32xf32>, vector<8x32xf32> -> vector<8x160xf32>
    %18 = tpu.concatenate %9, %17 in 0 : vector<8x160xf32>, vector<8x160xf32> -> vector<16x160xf32>
    %c0_1 = arith.constant 0 : index
    %c0_2 = arith.constant 0 : index
    %c0_3 = arith.constant 0 : index
    %19 = vector.load %arg3[%c0_1, %c0_2, %c0_3] : memref<3x160x32xf32, #tpu.memory_space<vmem>>, vector<1x160x32xf32>
    %20 = vector.shape_cast %19 : vector<1x160x32xf32> to vector<160x32xf32>
    %cst_4 = arith.constant dense<0.000000e+00> : vector<16x32xf32>
    %21 = tpu.matmul %18, %20, %cst_4 {dimension_numbers = #tpu.dot_dimension_numbers<[1], [0], [0], [1], [0, 0, 1, 1], [], []>} : vector<16x160xf32>, vector<160x32xf32>, vector<16x32xf32> -> vector<16x32xf32>
    %c0_5 = arith.constant 0 : index
    %c0_6 = arith.constant 0 : index
    %c0_7 = arith.constant 0 : index
    %22 = vector.load %arg4[%c0_5, %c0_6, %c0_7] : memref<3x1x32xf32, #tpu.memory_space<vmem>>, vector<1x1x32xf32>
    %23 = vector.shape_cast %22 : vector<1x1x32xf32> to vector<1x32xf32>
    %24 = vector.broadcast %23 : vector<1x32xf32> to vector<16x32xf32>
    %25 = arith.addf %21, %24 : vector<16x32xf32>
    %cst_8 = arith.constant 0.000000e+00 : f32
    %26 = vector.broadcast %cst_8 : f32 to vector<16x32xf32>
    %27 = arith.maximumf %25, %26 : vector<16x32xf32>
    %28 = vector.extract_strided_slice %27 {offsets = [0, 0], sizes = [8, 32], strides = [1, 1]} : vector<16x32xf32> to vector<8x32xf32>
    %29 = tpu.concatenate %1, %28, %1 in 0 : vector<2x32xf32>, vector<8x32xf32>, vector<2x32xf32> -> vector<12x32xf32>
    %30 = vector.extract_strided_slice %29 {offsets = [0, 0], sizes = [8, 32], strides = [1, 1]} : vector<12x32xf32> to vector<8x32xf32>
    %31 = vector.extract_strided_slice %29 {offsets = [1, 0], sizes = [8, 32], strides = [1, 1]} : vector<12x32xf32> to vector<8x32xf32>
    %32 = vector.extract_strided_slice %29 {offsets = [2, 0], sizes = [8, 32], strides = [1, 1]} : vector<12x32xf32> to vector<8x32xf32>
    %33 = vector.extract_strided_slice %29 {offsets = [3, 0], sizes = [8, 32], strides = [1, 1]} : vector<12x32xf32> to vector<8x32xf32>
    %34 = vector.extract_strided_slice %29 {offsets = [4, 0], sizes = [8, 32], strides = [1, 1]} : vector<12x32xf32> to vector<8x32xf32>
    %35 = tpu.concatenate %30, %31, %32, %33, %34 in 1 : vector<8x32xf32>, vector<8x32xf32>, vector<8x32xf32>, vector<8x32xf32>, vector<8x32xf32> -> vector<8x160xf32>
    %36 = vector.extract_strided_slice %27 {offsets = [8, 0], sizes = [8, 32], strides = [1, 1]} : vector<16x32xf32> to vector<8x32xf32>
    %37 = tpu.concatenate %1, %36, %1 in 0 : vector<2x32xf32>, vector<8x32xf32>, vector<2x32xf32> -> vector<12x32xf32>
    %38 = vector.extract_strided_slice %37 {offsets = [0, 0], sizes = [8, 32], strides = [1, 1]} : vector<12x32xf32> to vector<8x32xf32>
    %39 = vector.extract_strided_slice %37 {offsets = [1, 0], sizes = [8, 32], strides = [1, 1]} : vector<12x32xf32> to vector<8x32xf32>
    %40 = vector.extract_strided_slice %37 {offsets = [2, 0], sizes = [8, 32], strides = [1, 1]} : vector<12x32xf32> to vector<8x32xf32>
    %41 = vector.extract_strided_slice %37 {offsets = [3, 0], sizes = [8, 32], strides = [1, 1]} : vector<12x32xf32> to vector<8x32xf32>
    %42 = vector.extract_strided_slice %37 {offsets = [4, 0], sizes = [8, 32], strides = [1, 1]} : vector<12x32xf32> to vector<8x32xf32>
    %43 = tpu.concatenate %38, %39, %40, %41, %42 in 1 : vector<8x32xf32>, vector<8x32xf32>, vector<8x32xf32>, vector<8x32xf32>, vector<8x32xf32> -> vector<8x160xf32>
    %44 = tpu.concatenate %35, %43 in 0 : vector<8x160xf32>, vector<8x160xf32> -> vector<16x160xf32>
    %c1 = arith.constant 1 : index
    %c0_9 = arith.constant 0 : index
    %c0_10 = arith.constant 0 : index
    %45 = vector.load %arg3[%c1, %c0_9, %c0_10] : memref<3x160x32xf32, #tpu.memory_space<vmem>>, vector<1x160x32xf32>
    %46 = vector.shape_cast %45 : vector<1x160x32xf32> to vector<160x32xf32>
    %cst_11 = arith.constant dense<0.000000e+00> : vector<16x32xf32>
    %47 = tpu.matmul %44, %46, %cst_11 {dimension_numbers = #tpu.dot_dimension_numbers<[1], [0], [0], [1], [0, 0, 1, 1], [], []>} : vector<16x160xf32>, vector<160x32xf32>, vector<16x32xf32> -> vector<16x32xf32>
    %c1_12 = arith.constant 1 : index
    %c0_13 = arith.constant 0 : index
    %c0_14 = arith.constant 0 : index
    %48 = vector.load %arg4[%c1_12, %c0_13, %c0_14] : memref<3x1x32xf32, #tpu.memory_space<vmem>>, vector<1x1x32xf32>
    %49 = vector.shape_cast %48 : vector<1x1x32xf32> to vector<1x32xf32>
    %50 = vector.broadcast %49 : vector<1x32xf32> to vector<16x32xf32>
    %51 = arith.addf %47, %50 : vector<16x32xf32>
    %cst_15 = arith.constant 0.000000e+00 : f32
    %52 = vector.broadcast %cst_15 : f32 to vector<16x32xf32>
    %53 = arith.maximumf %51, %52 : vector<16x32xf32>
    %54 = vector.extract_strided_slice %53 {offsets = [0, 0], sizes = [8, 32], strides = [1, 1]} : vector<16x32xf32> to vector<8x32xf32>
    %55 = tpu.concatenate %1, %54, %1 in 0 : vector<2x32xf32>, vector<8x32xf32>, vector<2x32xf32> -> vector<12x32xf32>
    %56 = vector.extract_strided_slice %55 {offsets = [0, 0], sizes = [8, 32], strides = [1, 1]} : vector<12x32xf32> to vector<8x32xf32>
    %57 = vector.extract_strided_slice %55 {offsets = [1, 0], sizes = [8, 32], strides = [1, 1]} : vector<12x32xf32> to vector<8x32xf32>
    %58 = vector.extract_strided_slice %55 {offsets = [2, 0], sizes = [8, 32], strides = [1, 1]} : vector<12x32xf32> to vector<8x32xf32>
    %59 = vector.extract_strided_slice %55 {offsets = [3, 0], sizes = [8, 32], strides = [1, 1]} : vector<12x32xf32> to vector<8x32xf32>
    %60 = vector.extract_strided_slice %55 {offsets = [4, 0], sizes = [8, 32], strides = [1, 1]} : vector<12x32xf32> to vector<8x32xf32>
    %61 = tpu.concatenate %56, %57, %58, %59, %60 in 1 : vector<8x32xf32>, vector<8x32xf32>, vector<8x32xf32>, vector<8x32xf32>, vector<8x32xf32> -> vector<8x160xf32>
    %62 = vector.extract_strided_slice %53 {offsets = [8, 0], sizes = [8, 32], strides = [1, 1]} : vector<16x32xf32> to vector<8x32xf32>
    %63 = tpu.concatenate %1, %62, %1 in 0 : vector<2x32xf32>, vector<8x32xf32>, vector<2x32xf32> -> vector<12x32xf32>
    %64 = vector.extract_strided_slice %63 {offsets = [0, 0], sizes = [8, 32], strides = [1, 1]} : vector<12x32xf32> to vector<8x32xf32>
    %65 = vector.extract_strided_slice %63 {offsets = [1, 0], sizes = [8, 32], strides = [1, 1]} : vector<12x32xf32> to vector<8x32xf32>
    %66 = vector.extract_strided_slice %63 {offsets = [2, 0], sizes = [8, 32], strides = [1, 1]} : vector<12x32xf32> to vector<8x32xf32>
    %67 = vector.extract_strided_slice %63 {offsets = [3, 0], sizes = [8, 32], strides = [1, 1]} : vector<12x32xf32> to vector<8x32xf32>
    %68 = vector.extract_strided_slice %63 {offsets = [4, 0], sizes = [8, 32], strides = [1, 1]} : vector<12x32xf32> to vector<8x32xf32>
    %69 = tpu.concatenate %64, %65, %66, %67, %68 in 1 : vector<8x32xf32>, vector<8x32xf32>, vector<8x32xf32>, vector<8x32xf32>, vector<8x32xf32> -> vector<8x160xf32>
    %70 = tpu.concatenate %61, %69 in 0 : vector<8x160xf32>, vector<8x160xf32> -> vector<16x160xf32>
    %c2 = arith.constant 2 : index
    %c0_16 = arith.constant 0 : index
    %c0_17 = arith.constant 0 : index
    %71 = vector.load %arg3[%c2, %c0_16, %c0_17] : memref<3x160x32xf32, #tpu.memory_space<vmem>>, vector<1x160x32xf32>
    %72 = vector.shape_cast %71 : vector<1x160x32xf32> to vector<160x32xf32>
    %cst_18 = arith.constant dense<0.000000e+00> : vector<16x32xf32>
    %73 = tpu.matmul %70, %72, %cst_18 {dimension_numbers = #tpu.dot_dimension_numbers<[1], [0], [0], [1], [0, 0, 1, 1], [], []>} : vector<16x160xf32>, vector<160x32xf32>, vector<16x32xf32> -> vector<16x32xf32>
    %c2_19 = arith.constant 2 : index
    %c0_20 = arith.constant 0 : index
    %c0_21 = arith.constant 0 : index
    %74 = vector.load %arg4[%c2_19, %c0_20, %c0_21] : memref<3x1x32xf32, #tpu.memory_space<vmem>>, vector<1x1x32xf32>
    %75 = vector.shape_cast %74 : vector<1x1x32xf32> to vector<1x32xf32>
    %76 = vector.broadcast %75 : vector<1x32xf32> to vector<16x32xf32>
    %77 = arith.addf %73, %76 : vector<16x32xf32>
    %cst_22 = arith.constant 0.000000e+00 : f32
    %78 = vector.broadcast %cst_22 : f32 to vector<16x32xf32>
    %79 = arith.maximumf %77, %78 : vector<16x32xf32>
    %c0_23 = arith.constant 0 : index
    %c0_24 = arith.constant 0 : index
    %80 = vector.load %arg5[%c0_23, %c0_24] : memref<32x128xf32, #tpu.memory_space<vmem>>, vector<32x128xf32>
    %cst_25 = arith.constant dense<0.000000e+00> : vector<16x128xf32>
    %81 = tpu.matmul %79, %80, %cst_25 {dimension_numbers = #tpu.dot_dimension_numbers<[1], [0], [0], [1], [0, 0, 1, 1], [], []>} : vector<16x32xf32>, vector<32x128xf32>, vector<16x128xf32> -> vector<16x128xf32>
    %c0_26 = arith.constant 0 : index
    %c0_27 = arith.constant 0 : index
    %82 = vector.load %arg7[%c0_26, %c0_27] : memref<1x128xf32, #tpu.memory_space<vmem>>, vector<1x128xf32>
    %83 = vector.broadcast %82 : vector<1x128xf32> to vector<16x128xf32>
    %84 = arith.addf %81, %83 : vector<16x128xf32>
    %c0_28 = arith.constant 0 : index
    %c0_29 = arith.constant 0 : index
    %85 = vector.load %arg6[%c0_28, %c0_29] : memref<16x128xf32, #tpu.memory_space<vmem>>, vector<16x128xf32>
    %c0_30 = arith.constant 0 : index
    %86 = memref.load %arg1[%c0_30] : memref<2xi32, #tpu.memory_space<smem>>
    %87 = vector.broadcast %86 : i32 to vector<1x1xi32>
    %c1_31 = arith.constant 1 : index
    %88 = memref.load %arg1[%c1_31] : memref<2xi32, #tpu.memory_space<smem>>
    %89 = vector.broadcast %88 : i32 to vector<1x1xi32>
    %90 = tpu.concatenate %87, %89, %87, %89 in 0 : vector<1x1xi32>, vector<1x1xi32>, vector<1x1xi32>, vector<1x1xi32> -> vector<4x1xi32>
    %cst_32 = arith.constant 0.000000e+00 : f32
    %91 = vector.broadcast %cst_32 : f32 to vector<4x16xf32>
    %cst_33 = arith.constant 0.000000e+00 : f32
    %92 = vector.broadcast %cst_33 : f32 to vector<4x16xf32>
    %93 = vector.extract_strided_slice %84 {offsets = [0, 0], sizes = [1, 128], strides = [1, 1]} : vector<16x128xf32> to vector<1x128xf32>
    %94 = vector.extract_strided_slice %84 {offsets = [8, 0], sizes = [1, 128], strides = [1, 1]} : vector<16x128xf32> to vector<1x128xf32>
    %95 = vector.extract_strided_slice %84 {offsets = [7, 0], sizes = [1, 128], strides = [1, 1]} : vector<16x128xf32> to vector<1x128xf32>
    %96 = vector.extract_strided_slice %84 {offsets = [15, 0], sizes = [1, 128], strides = [1, 1]} : vector<16x128xf32> to vector<1x128xf32>
    %97 = tpu.concatenate %93, %94, %95, %96 in 0 : vector<1x128xf32>, vector<1x128xf32>, vector<1x128xf32>, vector<1x128xf32> -> vector<4x128xf32>
    %cst_34 = arith.constant dense<0.000000e+00> : vector<4x128xf32>
    %98 = tpu.matmul %91, %85, %cst_34 {dimension_numbers = #tpu.dot_dimension_numbers<[1], [0], [0], [1], [0, 0, 1, 1], [], []>} : vector<4x16xf32>, vector<16x128xf32>, vector<4x128xf32> -> vector<4x128xf32>
    %99 = arith.addf %97, %98 : vector<4x128xf32>
    %100 = vector.extract_strided_slice %99 {offsets = [0, 0], sizes = [2, 64], strides = [1, 1]} : vector<4x128xf32> to vector<2x64xf32>
    %101 = vector.extract_strided_slice %99 {offsets = [2, 64], sizes = [2, 64], strides = [1, 1]} : vector<4x128xf32> to vector<2x64xf32>
    %102 = tpu.concatenate %100, %101 in 0 : vector<2x64xf32>, vector<2x64xf32> -> vector<4x64xf32>
    %103 = vector.extract_strided_slice %102 {offsets = [0, 0], sizes = [4, 48], strides = [1, 1]} : vector<4x64xf32> to vector<4x48xf32>
    %104 = arith.negf %103 : vector<4x48xf32>
    %105 = math.exp %104 : vector<4x48xf32>
    %cst_35 = arith.constant 1.000000e+00 : f32
    %106 = vector.broadcast %cst_35 : f32 to vector<4x48xf32>
    %107 = arith.addf %106, %105 : vector<4x48xf32>
    %108 = arith.divf %106, %107 : vector<4x48xf32>
    %109 = vector.extract_strided_slice %102 {offsets = [0, 48], sizes = [4, 16], strides = [1, 1]} : vector<4x64xf32> to vector<4x16xf32>
    %110 = math.tanh %109 : vector<4x16xf32>
    %111 = vector.extract_strided_slice %108 {offsets = [0, 0], sizes = [4, 16], strides = [1, 1]} : vector<4x48xf32> to vector<4x16xf32>
    %112 = vector.extract_strided_slice %108 {offsets = [0, 16], sizes = [4, 16], strides = [1, 1]} : vector<4x48xf32> to vector<4x16xf32>
    %113 = vector.extract_strided_slice %108 {offsets = [0, 32], sizes = [4, 16], strides = [1, 1]} : vector<4x48xf32> to vector<4x16xf32>
    %114 = arith.mulf %112, %92 : vector<4x16xf32>
    %115 = arith.mulf %111, %110 : vector<4x16xf32>
    %116 = arith.addf %114, %115 : vector<4x16xf32>
    %117 = math.tanh %116 : vector<4x16xf32>
    %118 = arith.mulf %113, %117 : vector<4x16xf32>
    %c0_i32 = arith.constant 0 : i32
    %119 = vector.broadcast %c0_i32 : i32 to vector<2x1xi32>
    %c7_i32 = arith.constant 7 : i32
    %120 = vector.broadcast %c7_i32 : i32 to vector<2x1xi32>
    %121 = tpu.concatenate %119, %120 in 0 : vector<2x1xi32>, vector<2x1xi32> -> vector<4x1xi32>
    %122 = arith.cmpi sgt, %90, %121 : vector<4x1xi32>
    %123 = vector.shape_cast %122 : vector<4x1xi1> to vector<4x1xi1>
    %124 = vector.broadcast %123 : vector<4x1xi1> to vector<4x16xi1>
    %125 = arith.select %124, %118, %91 : vector<4x16xi1>, vector<4x16xf32>
    %126 = vector.shape_cast %122 : vector<4x1xi1> to vector<4x1xi1>
    %127 = vector.broadcast %126 : vector<4x1xi1> to vector<4x16xi1>
    %128 = arith.select %127, %116, %92 : vector<4x16xi1>, vector<4x16xf32>
    %cst_36 = arith.constant 0.000000e+00 : f32
    %129 = vector.shape_cast %122 : vector<4x1xi1> to vector<4x1xi1>
    %130 = vector.broadcast %129 : vector<4x1xi1> to vector<4x16xi1>
    %131 = vector.broadcast %cst_36 : f32 to vector<4x16xf32>
    %132 = arith.select %130, %118, %131 : vector<4x16xi1>, vector<4x16xf32>
    %133 = vector.extract_strided_slice %132 {offsets = [0, 0], sizes = [2, 16], strides = [1, 1]} : vector<4x16xf32> to vector<2x16xf32>
    %134 = vector.extract_strided_slice %132 {offsets = [2, 0], sizes = [2, 16], strides = [1, 1]} : vector<4x16xf32> to vector<2x16xf32>
    %135 = vector.extract_strided_slice %84 {offsets = [1, 0], sizes = [1, 128], strides = [1, 1]} : vector<16x128xf32> to vector<1x128xf32>
    %136 = vector.extract_strided_slice %84 {offsets = [9, 0], sizes = [1, 128], strides = [1, 1]} : vector<16x128xf32> to vector<1x128xf32>
    %137 = vector.extract_strided_slice %84 {offsets = [6, 0], sizes = [1, 128], strides = [1, 1]} : vector<16x128xf32> to vector<1x128xf32>
    %138 = vector.extract_strided_slice %84 {offsets = [14, 0], sizes = [1, 128], strides = [1, 1]} : vector<16x128xf32> to vector<1x128xf32>
    %139 = tpu.concatenate %135, %136, %137, %138 in 0 : vector<1x128xf32>, vector<1x128xf32>, vector<1x128xf32>, vector<1x128xf32> -> vector<4x128xf32>
    %cst_37 = arith.constant dense<0.000000e+00> : vector<4x128xf32>
    %140 = tpu.matmul %125, %85, %cst_37 {dimension_numbers = #tpu.dot_dimension_numbers<[1], [0], [0], [1], [0, 0, 1, 1], [], []>} : vector<4x16xf32>, vector<16x128xf32>, vector<4x128xf32> -> vector<4x128xf32>
    %141 = arith.addf %139, %140 : vector<4x128xf32>
    %142 = vector.extract_strided_slice %141 {offsets = [0, 0], sizes = [2, 64], strides = [1, 1]} : vector<4x128xf32> to vector<2x64xf32>
    %143 = vector.extract_strided_slice %141 {offsets = [2, 64], sizes = [2, 64], strides = [1, 1]} : vector<4x128xf32> to vector<2x64xf32>
    %144 = tpu.concatenate %142, %143 in 0 : vector<2x64xf32>, vector<2x64xf32> -> vector<4x64xf32>
    %145 = vector.extract_strided_slice %144 {offsets = [0, 0], sizes = [4, 48], strides = [1, 1]} : vector<4x64xf32> to vector<4x48xf32>
    %146 = arith.negf %145 : vector<4x48xf32>
    %147 = math.exp %146 : vector<4x48xf32>
    %cst_38 = arith.constant 1.000000e+00 : f32
    %148 = vector.broadcast %cst_38 : f32 to vector<4x48xf32>
    %149 = arith.addf %148, %147 : vector<4x48xf32>
    %150 = arith.divf %148, %149 : vector<4x48xf32>
    %151 = vector.extract_strided_slice %144 {offsets = [0, 48], sizes = [4, 16], strides = [1, 1]} : vector<4x64xf32> to vector<4x16xf32>
    %152 = math.tanh %151 : vector<4x16xf32>
    %153 = vector.extract_strided_slice %150 {offsets = [0, 0], sizes = [4, 16], strides = [1, 1]} : vector<4x48xf32> to vector<4x16xf32>
    %154 = vector.extract_strided_slice %150 {offsets = [0, 16], sizes = [4, 16], strides = [1, 1]} : vector<4x48xf32> to vector<4x16xf32>
    %155 = vector.extract_strided_slice %150 {offsets = [0, 32], sizes = [4, 16], strides = [1, 1]} : vector<4x48xf32> to vector<4x16xf32>
    %156 = arith.mulf %154, %128 : vector<4x16xf32>
    %157 = arith.mulf %153, %152 : vector<4x16xf32>
    %158 = arith.addf %156, %157 : vector<4x16xf32>
    %159 = math.tanh %158 : vector<4x16xf32>
    %160 = arith.mulf %155, %159 : vector<4x16xf32>
    %c1_i32 = arith.constant 1 : i32
    %161 = vector.broadcast %c1_i32 : i32 to vector<2x1xi32>
    %c6_i32 = arith.constant 6 : i32
    %162 = vector.broadcast %c6_i32 : i32 to vector<2x1xi32>
    %163 = tpu.concatenate %161, %162 in 0 : vector<2x1xi32>, vector<2x1xi32> -> vector<4x1xi32>
    %164 = arith.cmpi sgt, %90, %163 : vector<4x1xi32>
    %165 = vector.shape_cast %164 : vector<4x1xi1> to vector<4x1xi1>
    %166 = vector.broadcast %165 : vector<4x1xi1> to vector<4x16xi1>
    %167 = arith.select %166, %160, %125 : vector<4x16xi1>, vector<4x16xf32>
    %168 = vector.shape_cast %164 : vector<4x1xi1> to vector<4x1xi1>
    %169 = vector.broadcast %168 : vector<4x1xi1> to vector<4x16xi1>
    %170 = arith.select %169, %158, %128 : vector<4x16xi1>, vector<4x16xf32>
    %cst_39 = arith.constant 0.000000e+00 : f32
    %171 = vector.shape_cast %164 : vector<4x1xi1> to vector<4x1xi1>
    %172 = vector.broadcast %171 : vector<4x1xi1> to vector<4x16xi1>
    %173 = vector.broadcast %cst_39 : f32 to vector<4x16xf32>
    %174 = arith.select %172, %160, %173 : vector<4x16xi1>, vector<4x16xf32>
    %175 = vector.extract_strided_slice %174 {offsets = [0, 0], sizes = [2, 16], strides = [1, 1]} : vector<4x16xf32> to vector<2x16xf32>
    %176 = vector.extract_strided_slice %174 {offsets = [2, 0], sizes = [2, 16], strides = [1, 1]} : vector<4x16xf32> to vector<2x16xf32>
    %177 = vector.extract_strided_slice %84 {offsets = [2, 0], sizes = [1, 128], strides = [1, 1]} : vector<16x128xf32> to vector<1x128xf32>
    %178 = vector.extract_strided_slice %84 {offsets = [10, 0], sizes = [1, 128], strides = [1, 1]} : vector<16x128xf32> to vector<1x128xf32>
    %179 = vector.extract_strided_slice %84 {offsets = [5, 0], sizes = [1, 128], strides = [1, 1]} : vector<16x128xf32> to vector<1x128xf32>
    %180 = vector.extract_strided_slice %84 {offsets = [13, 0], sizes = [1, 128], strides = [1, 1]} : vector<16x128xf32> to vector<1x128xf32>
    %181 = tpu.concatenate %177, %178, %179, %180 in 0 : vector<1x128xf32>, vector<1x128xf32>, vector<1x128xf32>, vector<1x128xf32> -> vector<4x128xf32>
    %cst_40 = arith.constant dense<0.000000e+00> : vector<4x128xf32>
    %182 = tpu.matmul %167, %85, %cst_40 {dimension_numbers = #tpu.dot_dimension_numbers<[1], [0], [0], [1], [0, 0, 1, 1], [], []>} : vector<4x16xf32>, vector<16x128xf32>, vector<4x128xf32> -> vector<4x128xf32>
    %183 = arith.addf %181, %182 : vector<4x128xf32>
    %184 = vector.extract_strided_slice %183 {offsets = [0, 0], sizes = [2, 64], strides = [1, 1]} : vector<4x128xf32> to vector<2x64xf32>
    %185 = vector.extract_strided_slice %183 {offsets = [2, 64], sizes = [2, 64], strides = [1, 1]} : vector<4x128xf32> to vector<2x64xf32>
    %186 = tpu.concatenate %184, %185 in 0 : vector<2x64xf32>, vector<2x64xf32> -> vector<4x64xf32>
    %187 = vector.extract_strided_slice %186 {offsets = [0, 0], sizes = [4, 48], strides = [1, 1]} : vector<4x64xf32> to vector<4x48xf32>
    %188 = arith.negf %187 : vector<4x48xf32>
    %189 = math.exp %188 : vector<4x48xf32>
    %cst_41 = arith.constant 1.000000e+00 : f32
    %190 = vector.broadcast %cst_41 : f32 to vector<4x48xf32>
    %191 = arith.addf %190, %189 : vector<4x48xf32>
    %192 = arith.divf %190, %191 : vector<4x48xf32>
    %193 = vector.extract_strided_slice %186 {offsets = [0, 48], sizes = [4, 16], strides = [1, 1]} : vector<4x64xf32> to vector<4x16xf32>
    %194 = math.tanh %193 : vector<4x16xf32>
    %195 = vector.extract_strided_slice %192 {offsets = [0, 0], sizes = [4, 16], strides = [1, 1]} : vector<4x48xf32> to vector<4x16xf32>
    %196 = vector.extract_strided_slice %192 {offsets = [0, 16], sizes = [4, 16], strides = [1, 1]} : vector<4x48xf32> to vector<4x16xf32>
    %197 = vector.extract_strided_slice %192 {offsets = [0, 32], sizes = [4, 16], strides = [1, 1]} : vector<4x48xf32> to vector<4x16xf32>
    %198 = arith.mulf %196, %170 : vector<4x16xf32>
    %199 = arith.mulf %195, %194 : vector<4x16xf32>
    %200 = arith.addf %198, %199 : vector<4x16xf32>
    %201 = math.tanh %200 : vector<4x16xf32>
    %202 = arith.mulf %197, %201 : vector<4x16xf32>
    %c2_i32 = arith.constant 2 : i32
    %203 = vector.broadcast %c2_i32 : i32 to vector<2x1xi32>
    %c5_i32 = arith.constant 5 : i32
    %204 = vector.broadcast %c5_i32 : i32 to vector<2x1xi32>
    %205 = tpu.concatenate %203, %204 in 0 : vector<2x1xi32>, vector<2x1xi32> -> vector<4x1xi32>
    %206 = arith.cmpi sgt, %90, %205 : vector<4x1xi32>
    %207 = vector.shape_cast %206 : vector<4x1xi1> to vector<4x1xi1>
    %208 = vector.broadcast %207 : vector<4x1xi1> to vector<4x16xi1>
    %209 = arith.select %208, %202, %167 : vector<4x16xi1>, vector<4x16xf32>
    %210 = vector.shape_cast %206 : vector<4x1xi1> to vector<4x1xi1>
    %211 = vector.broadcast %210 : vector<4x1xi1> to vector<4x16xi1>
    %212 = arith.select %211, %200, %170 : vector<4x16xi1>, vector<4x16xf32>
    %cst_42 = arith.constant 0.000000e+00 : f32
    %213 = vector.shape_cast %206 : vector<4x1xi1> to vector<4x1xi1>
    %214 = vector.broadcast %213 : vector<4x1xi1> to vector<4x16xi1>
    %215 = vector.broadcast %cst_42 : f32 to vector<4x16xf32>
    %216 = arith.select %214, %202, %215 : vector<4x16xi1>, vector<4x16xf32>
    %217 = vector.extract_strided_slice %216 {offsets = [0, 0], sizes = [2, 16], strides = [1, 1]} : vector<4x16xf32> to vector<2x16xf32>
    %218 = vector.extract_strided_slice %216 {offsets = [2, 0], sizes = [2, 16], strides = [1, 1]} : vector<4x16xf32> to vector<2x16xf32>
    %219 = vector.extract_strided_slice %84 {offsets = [3, 0], sizes = [1, 128], strides = [1, 1]} : vector<16x128xf32> to vector<1x128xf32>
    %220 = vector.extract_strided_slice %84 {offsets = [11, 0], sizes = [1, 128], strides = [1, 1]} : vector<16x128xf32> to vector<1x128xf32>
    %221 = vector.extract_strided_slice %84 {offsets = [4, 0], sizes = [1, 128], strides = [1, 1]} : vector<16x128xf32> to vector<1x128xf32>
    %222 = vector.extract_strided_slice %84 {offsets = [12, 0], sizes = [1, 128], strides = [1, 1]} : vector<16x128xf32> to vector<1x128xf32>
    %223 = tpu.concatenate %219, %220, %221, %222 in 0 : vector<1x128xf32>, vector<1x128xf32>, vector<1x128xf32>, vector<1x128xf32> -> vector<4x128xf32>
    %cst_43 = arith.constant dense<0.000000e+00> : vector<4x128xf32>
    %224 = tpu.matmul %209, %85, %cst_43 {dimension_numbers = #tpu.dot_dimension_numbers<[1], [0], [0], [1], [0, 0, 1, 1], [], []>} : vector<4x16xf32>, vector<16x128xf32>, vector<4x128xf32> -> vector<4x128xf32>
    %225 = arith.addf %223, %224 : vector<4x128xf32>
    %226 = vector.extract_strided_slice %225 {offsets = [0, 0], sizes = [2, 64], strides = [1, 1]} : vector<4x128xf32> to vector<2x64xf32>
    %227 = vector.extract_strided_slice %225 {offsets = [2, 64], sizes = [2, 64], strides = [1, 1]} : vector<4x128xf32> to vector<2x64xf32>
    %228 = tpu.concatenate %226, %227 in 0 : vector<2x64xf32>, vector<2x64xf32> -> vector<4x64xf32>
    %229 = vector.extract_strided_slice %228 {offsets = [0, 0], sizes = [4, 48], strides = [1, 1]} : vector<4x64xf32> to vector<4x48xf32>
    %230 = arith.negf %229 : vector<4x48xf32>
    %231 = math.exp %230 : vector<4x48xf32>
    %cst_44 = arith.constant 1.000000e+00 : f32
    %232 = vector.broadcast %cst_44 : f32 to vector<4x48xf32>
    %233 = arith.addf %232, %231 : vector<4x48xf32>
    %234 = arith.divf %232, %233 : vector<4x48xf32>
    %235 = vector.extract_strided_slice %228 {offsets = [0, 48], sizes = [4, 16], strides = [1, 1]} : vector<4x64xf32> to vector<4x16xf32>
    %236 = math.tanh %235 : vector<4x16xf32>
    %237 = vector.extract_strided_slice %234 {offsets = [0, 0], sizes = [4, 16], strides = [1, 1]} : vector<4x48xf32> to vector<4x16xf32>
    %238 = vector.extract_strided_slice %234 {offsets = [0, 16], sizes = [4, 16], strides = [1, 1]} : vector<4x48xf32> to vector<4x16xf32>
    %239 = vector.extract_strided_slice %234 {offsets = [0, 32], sizes = [4, 16], strides = [1, 1]} : vector<4x48xf32> to vector<4x16xf32>
    %240 = arith.mulf %238, %212 : vector<4x16xf32>
    %241 = arith.mulf %237, %236 : vector<4x16xf32>
    %242 = arith.addf %240, %241 : vector<4x16xf32>
    %243 = math.tanh %242 : vector<4x16xf32>
    %244 = arith.mulf %239, %243 : vector<4x16xf32>
    %c3_i32 = arith.constant 3 : i32
    %245 = vector.broadcast %c3_i32 : i32 to vector<2x1xi32>
    %c4_i32 = arith.constant 4 : i32
    %246 = vector.broadcast %c4_i32 : i32 to vector<2x1xi32>
    %247 = tpu.concatenate %245, %246 in 0 : vector<2x1xi32>, vector<2x1xi32> -> vector<4x1xi32>
    %248 = arith.cmpi sgt, %90, %247 : vector<4x1xi32>
    %249 = vector.shape_cast %248 : vector<4x1xi1> to vector<4x1xi1>
    %250 = vector.broadcast %249 : vector<4x1xi1> to vector<4x16xi1>
    %251 = arith.select %250, %244, %209 : vector<4x16xi1>, vector<4x16xf32>
    %252 = vector.shape_cast %248 : vector<4x1xi1> to vector<4x1xi1>
    %253 = vector.broadcast %252 : vector<4x1xi1> to vector<4x16xi1>
    %254 = arith.select %253, %242, %212 : vector<4x16xi1>, vector<4x16xf32>
    %cst_45 = arith.constant 0.000000e+00 : f32
    %255 = vector.shape_cast %248 : vector<4x1xi1> to vector<4x1xi1>
    %256 = vector.broadcast %255 : vector<4x1xi1> to vector<4x16xi1>
    %257 = vector.broadcast %cst_45 : f32 to vector<4x16xf32>
    %258 = arith.select %256, %244, %257 : vector<4x16xi1>, vector<4x16xf32>
    %259 = vector.extract_strided_slice %258 {offsets = [0, 0], sizes = [2, 16], strides = [1, 1]} : vector<4x16xf32> to vector<2x16xf32>
    %260 = vector.extract_strided_slice %258 {offsets = [2, 0], sizes = [2, 16], strides = [1, 1]} : vector<4x16xf32> to vector<2x16xf32>
    %261 = vector.extract_strided_slice %84 {offsets = [4, 0], sizes = [1, 128], strides = [1, 1]} : vector<16x128xf32> to vector<1x128xf32>
    %262 = vector.extract_strided_slice %84 {offsets = [12, 0], sizes = [1, 128], strides = [1, 1]} : vector<16x128xf32> to vector<1x128xf32>
    %263 = vector.extract_strided_slice %84 {offsets = [3, 0], sizes = [1, 128], strides = [1, 1]} : vector<16x128xf32> to vector<1x128xf32>
    %264 = vector.extract_strided_slice %84 {offsets = [11, 0], sizes = [1, 128], strides = [1, 1]} : vector<16x128xf32> to vector<1x128xf32>
    %265 = tpu.concatenate %261, %262, %263, %264 in 0 : vector<1x128xf32>, vector<1x128xf32>, vector<1x128xf32>, vector<1x128xf32> -> vector<4x128xf32>
    %cst_46 = arith.constant dense<0.000000e+00> : vector<4x128xf32>
    %266 = tpu.matmul %251, %85, %cst_46 {dimension_numbers = #tpu.dot_dimension_numbers<[1], [0], [0], [1], [0, 0, 1, 1], [], []>} : vector<4x16xf32>, vector<16x128xf32>, vector<4x128xf32> -> vector<4x128xf32>
    %267 = arith.addf %265, %266 : vector<4x128xf32>
    %268 = vector.extract_strided_slice %267 {offsets = [0, 0], sizes = [2, 64], strides = [1, 1]} : vector<4x128xf32> to vector<2x64xf32>
    %269 = vector.extract_strided_slice %267 {offsets = [2, 64], sizes = [2, 64], strides = [1, 1]} : vector<4x128xf32> to vector<2x64xf32>
    %270 = tpu.concatenate %268, %269 in 0 : vector<2x64xf32>, vector<2x64xf32> -> vector<4x64xf32>
    %271 = vector.extract_strided_slice %270 {offsets = [0, 0], sizes = [4, 48], strides = [1, 1]} : vector<4x64xf32> to vector<4x48xf32>
    %272 = arith.negf %271 : vector<4x48xf32>
    %273 = math.exp %272 : vector<4x48xf32>
    %cst_47 = arith.constant 1.000000e+00 : f32
    %274 = vector.broadcast %cst_47 : f32 to vector<4x48xf32>
    %275 = arith.addf %274, %273 : vector<4x48xf32>
    %276 = arith.divf %274, %275 : vector<4x48xf32>
    %277 = vector.extract_strided_slice %270 {offsets = [0, 48], sizes = [4, 16], strides = [1, 1]} : vector<4x64xf32> to vector<4x16xf32>
    %278 = math.tanh %277 : vector<4x16xf32>
    %279 = vector.extract_strided_slice %276 {offsets = [0, 0], sizes = [4, 16], strides = [1, 1]} : vector<4x48xf32> to vector<4x16xf32>
    %280 = vector.extract_strided_slice %276 {offsets = [0, 16], sizes = [4, 16], strides = [1, 1]} : vector<4x48xf32> to vector<4x16xf32>
    %281 = vector.extract_strided_slice %276 {offsets = [0, 32], sizes = [4, 16], strides = [1, 1]} : vector<4x48xf32> to vector<4x16xf32>
    %282 = arith.mulf %280, %254 : vector<4x16xf32>
    %283 = arith.mulf %279, %278 : vector<4x16xf32>
    %284 = arith.addf %282, %283 : vector<4x16xf32>
    %285 = math.tanh %284 : vector<4x16xf32>
    %286 = arith.mulf %281, %285 : vector<4x16xf32>
    %c4_i32_48 = arith.constant 4 : i32
    %287 = vector.broadcast %c4_i32_48 : i32 to vector<2x1xi32>
    %c3_i32_49 = arith.constant 3 : i32
    %288 = vector.broadcast %c3_i32_49 : i32 to vector<2x1xi32>
    %289 = tpu.concatenate %287, %288 in 0 : vector<2x1xi32>, vector<2x1xi32> -> vector<4x1xi32>
    %290 = arith.cmpi sgt, %90, %289 : vector<4x1xi32>
    %291 = vector.shape_cast %290 : vector<4x1xi1> to vector<4x1xi1>
    %292 = vector.broadcast %291 : vector<4x1xi1> to vector<4x16xi1>
    %293 = arith.select %292, %286, %251 : vector<4x16xi1>, vector<4x16xf32>
    %294 = vector.shape_cast %290 : vector<4x1xi1> to vector<4x1xi1>
    %295 = vector.broadcast %294 : vector<4x1xi1> to vector<4x16xi1>
    %296 = arith.select %295, %284, %254 : vector<4x16xi1>, vector<4x16xf32>
    %cst_50 = arith.constant 0.000000e+00 : f32
    %297 = vector.shape_cast %290 : vector<4x1xi1> to vector<4x1xi1>
    %298 = vector.broadcast %297 : vector<4x1xi1> to vector<4x16xi1>
    %299 = vector.broadcast %cst_50 : f32 to vector<4x16xf32>
    %300 = arith.select %298, %286, %299 : vector<4x16xi1>, vector<4x16xf32>
    %301 = vector.extract_strided_slice %300 {offsets = [0, 0], sizes = [2, 16], strides = [1, 1]} : vector<4x16xf32> to vector<2x16xf32>
    %302 = vector.extract_strided_slice %300 {offsets = [2, 0], sizes = [2, 16], strides = [1, 1]} : vector<4x16xf32> to vector<2x16xf32>
    %303 = vector.extract_strided_slice %84 {offsets = [5, 0], sizes = [1, 128], strides = [1, 1]} : vector<16x128xf32> to vector<1x128xf32>
    %304 = vector.extract_strided_slice %84 {offsets = [13, 0], sizes = [1, 128], strides = [1, 1]} : vector<16x128xf32> to vector<1x128xf32>
    %305 = vector.extract_strided_slice %84 {offsets = [2, 0], sizes = [1, 128], strides = [1, 1]} : vector<16x128xf32> to vector<1x128xf32>
    %306 = vector.extract_strided_slice %84 {offsets = [10, 0], sizes = [1, 128], strides = [1, 1]} : vector<16x128xf32> to vector<1x128xf32>
    %307 = tpu.concatenate %303, %304, %305, %306 in 0 : vector<1x128xf32>, vector<1x128xf32>, vector<1x128xf32>, vector<1x128xf32> -> vector<4x128xf32>
    %cst_51 = arith.constant dense<0.000000e+00> : vector<4x128xf32>
    %308 = tpu.matmul %293, %85, %cst_51 {dimension_numbers = #tpu.dot_dimension_numbers<[1], [0], [0], [1], [0, 0, 1, 1], [], []>} : vector<4x16xf32>, vector<16x128xf32>, vector<4x128xf32> -> vector<4x128xf32>
    %309 = arith.addf %307, %308 : vector<4x128xf32>
    %310 = vector.extract_strided_slice %309 {offsets = [0, 0], sizes = [2, 64], strides = [1, 1]} : vector<4x128xf32> to vector<2x64xf32>
    %311 = vector.extract_strided_slice %309 {offsets = [2, 64], sizes = [2, 64], strides = [1, 1]} : vector<4x128xf32> to vector<2x64xf32>
    %312 = tpu.concatenate %310, %311 in 0 : vector<2x64xf32>, vector<2x64xf32> -> vector<4x64xf32>
    %313 = vector.extract_strided_slice %312 {offsets = [0, 0], sizes = [4, 48], strides = [1, 1]} : vector<4x64xf32> to vector<4x48xf32>
    %314 = arith.negf %313 : vector<4x48xf32>
    %315 = math.exp %314 : vector<4x48xf32>
    %cst_52 = arith.constant 1.000000e+00 : f32
    %316 = vector.broadcast %cst_52 : f32 to vector<4x48xf32>
    %317 = arith.addf %316, %315 : vector<4x48xf32>
    %318 = arith.divf %316, %317 : vector<4x48xf32>
    %319 = vector.extract_strided_slice %312 {offsets = [0, 48], sizes = [4, 16], strides = [1, 1]} : vector<4x64xf32> to vector<4x16xf32>
    %320 = math.tanh %319 : vector<4x16xf32>
    %321 = vector.extract_strided_slice %318 {offsets = [0, 0], sizes = [4, 16], strides = [1, 1]} : vector<4x48xf32> to vector<4x16xf32>
    %322 = vector.extract_strided_slice %318 {offsets = [0, 16], sizes = [4, 16], strides = [1, 1]} : vector<4x48xf32> to vector<4x16xf32>
    %323 = vector.extract_strided_slice %318 {offsets = [0, 32], sizes = [4, 16], strides = [1, 1]} : vector<4x48xf32> to vector<4x16xf32>
    %324 = arith.mulf %322, %296 : vector<4x16xf32>
    %325 = arith.mulf %321, %320 : vector<4x16xf32>
    %326 = arith.addf %324, %325 : vector<4x16xf32>
    %327 = math.tanh %326 : vector<4x16xf32>
    %328 = arith.mulf %323, %327 : vector<4x16xf32>
    %c5_i32_53 = arith.constant 5 : i32
    %329 = vector.broadcast %c5_i32_53 : i32 to vector<2x1xi32>
    %c2_i32_54 = arith.constant 2 : i32
    %330 = vector.broadcast %c2_i32_54 : i32 to vector<2x1xi32>
    %331 = tpu.concatenate %329, %330 in 0 : vector<2x1xi32>, vector<2x1xi32> -> vector<4x1xi32>
    %332 = arith.cmpi sgt, %90, %331 : vector<4x1xi32>
    %333 = vector.shape_cast %332 : vector<4x1xi1> to vector<4x1xi1>
    %334 = vector.broadcast %333 : vector<4x1xi1> to vector<4x16xi1>
    %335 = arith.select %334, %328, %293 : vector<4x16xi1>, vector<4x16xf32>
    %336 = vector.shape_cast %332 : vector<4x1xi1> to vector<4x1xi1>
    %337 = vector.broadcast %336 : vector<4x1xi1> to vector<4x16xi1>
    %338 = arith.select %337, %326, %296 : vector<4x16xi1>, vector<4x16xf32>
    %cst_55 = arith.constant 0.000000e+00 : f32
    %339 = vector.shape_cast %332 : vector<4x1xi1> to vector<4x1xi1>
    %340 = vector.broadcast %339 : vector<4x1xi1> to vector<4x16xi1>
    %341 = vector.broadcast %cst_55 : f32 to vector<4x16xf32>
    %342 = arith.select %340, %328, %341 : vector<4x16xi1>, vector<4x16xf32>
    %343 = vector.extract_strided_slice %342 {offsets = [0, 0], sizes = [2, 16], strides = [1, 1]} : vector<4x16xf32> to vector<2x16xf32>
    %344 = vector.extract_strided_slice %342 {offsets = [2, 0], sizes = [2, 16], strides = [1, 1]} : vector<4x16xf32> to vector<2x16xf32>
    %345 = vector.extract_strided_slice %84 {offsets = [6, 0], sizes = [1, 128], strides = [1, 1]} : vector<16x128xf32> to vector<1x128xf32>
    %346 = vector.extract_strided_slice %84 {offsets = [14, 0], sizes = [1, 128], strides = [1, 1]} : vector<16x128xf32> to vector<1x128xf32>
    %347 = vector.extract_strided_slice %84 {offsets = [1, 0], sizes = [1, 128], strides = [1, 1]} : vector<16x128xf32> to vector<1x128xf32>
    %348 = vector.extract_strided_slice %84 {offsets = [9, 0], sizes = [1, 128], strides = [1, 1]} : vector<16x128xf32> to vector<1x128xf32>
    %349 = tpu.concatenate %345, %346, %347, %348 in 0 : vector<1x128xf32>, vector<1x128xf32>, vector<1x128xf32>, vector<1x128xf32> -> vector<4x128xf32>
    %cst_56 = arith.constant dense<0.000000e+00> : vector<4x128xf32>
    %350 = tpu.matmul %335, %85, %cst_56 {dimension_numbers = #tpu.dot_dimension_numbers<[1], [0], [0], [1], [0, 0, 1, 1], [], []>} : vector<4x16xf32>, vector<16x128xf32>, vector<4x128xf32> -> vector<4x128xf32>
    %351 = arith.addf %349, %350 : vector<4x128xf32>
    %352 = vector.extract_strided_slice %351 {offsets = [0, 0], sizes = [2, 64], strides = [1, 1]} : vector<4x128xf32> to vector<2x64xf32>
    %353 = vector.extract_strided_slice %351 {offsets = [2, 64], sizes = [2, 64], strides = [1, 1]} : vector<4x128xf32> to vector<2x64xf32>
    %354 = tpu.concatenate %352, %353 in 0 : vector<2x64xf32>, vector<2x64xf32> -> vector<4x64xf32>
    %355 = vector.extract_strided_slice %354 {offsets = [0, 0], sizes = [4, 48], strides = [1, 1]} : vector<4x64xf32> to vector<4x48xf32>
    %356 = arith.negf %355 : vector<4x48xf32>
    %357 = math.exp %356 : vector<4x48xf32>
    %cst_57 = arith.constant 1.000000e+00 : f32
    %358 = vector.broadcast %cst_57 : f32 to vector<4x48xf32>
    %359 = arith.addf %358, %357 : vector<4x48xf32>
    %360 = arith.divf %358, %359 : vector<4x48xf32>
    %361 = vector.extract_strided_slice %354 {offsets = [0, 48], sizes = [4, 16], strides = [1, 1]} : vector<4x64xf32> to vector<4x16xf32>
    %362 = math.tanh %361 : vector<4x16xf32>
    %363 = vector.extract_strided_slice %360 {offsets = [0, 0], sizes = [4, 16], strides = [1, 1]} : vector<4x48xf32> to vector<4x16xf32>
    %364 = vector.extract_strided_slice %360 {offsets = [0, 16], sizes = [4, 16], strides = [1, 1]} : vector<4x48xf32> to vector<4x16xf32>
    %365 = vector.extract_strided_slice %360 {offsets = [0, 32], sizes = [4, 16], strides = [1, 1]} : vector<4x48xf32> to vector<4x16xf32>
    %366 = arith.mulf %364, %338 : vector<4x16xf32>
    %367 = arith.mulf %363, %362 : vector<4x16xf32>
    %368 = arith.addf %366, %367 : vector<4x16xf32>
    %369 = math.tanh %368 : vector<4x16xf32>
    %370 = arith.mulf %365, %369 : vector<4x16xf32>
    %c6_i32_58 = arith.constant 6 : i32
    %371 = vector.broadcast %c6_i32_58 : i32 to vector<2x1xi32>
    %c1_i32_59 = arith.constant 1 : i32
    %372 = vector.broadcast %c1_i32_59 : i32 to vector<2x1xi32>
    %373 = tpu.concatenate %371, %372 in 0 : vector<2x1xi32>, vector<2x1xi32> -> vector<4x1xi32>
    %374 = arith.cmpi sgt, %90, %373 : vector<4x1xi32>
    %375 = vector.shape_cast %374 : vector<4x1xi1> to vector<4x1xi1>
    %376 = vector.broadcast %375 : vector<4x1xi1> to vector<4x16xi1>
    %377 = arith.select %376, %370, %335 : vector<4x16xi1>, vector<4x16xf32>
    %378 = vector.shape_cast %374 : vector<4x1xi1> to vector<4x1xi1>
    %379 = vector.broadcast %378 : vector<4x1xi1> to vector<4x16xi1>
    %380 = arith.select %379, %368, %338 : vector<4x16xi1>, vector<4x16xf32>
    %cst_60 = arith.constant 0.000000e+00 : f32
    %381 = vector.shape_cast %374 : vector<4x1xi1> to vector<4x1xi1>
    %382 = vector.broadcast %381 : vector<4x1xi1> to vector<4x16xi1>
    %383 = vector.broadcast %cst_60 : f32 to vector<4x16xf32>
    %384 = arith.select %382, %370, %383 : vector<4x16xi1>, vector<4x16xf32>
    %385 = vector.extract_strided_slice %384 {offsets = [0, 0], sizes = [2, 16], strides = [1, 1]} : vector<4x16xf32> to vector<2x16xf32>
    %386 = vector.extract_strided_slice %384 {offsets = [2, 0], sizes = [2, 16], strides = [1, 1]} : vector<4x16xf32> to vector<2x16xf32>
    %387 = vector.extract_strided_slice %84 {offsets = [7, 0], sizes = [1, 128], strides = [1, 1]} : vector<16x128xf32> to vector<1x128xf32>
    %388 = vector.extract_strided_slice %84 {offsets = [15, 0], sizes = [1, 128], strides = [1, 1]} : vector<16x128xf32> to vector<1x128xf32>
    %389 = vector.extract_strided_slice %84 {offsets = [0, 0], sizes = [1, 128], strides = [1, 1]} : vector<16x128xf32> to vector<1x128xf32>
    %390 = vector.extract_strided_slice %84 {offsets = [8, 0], sizes = [1, 128], strides = [1, 1]} : vector<16x128xf32> to vector<1x128xf32>
    %391 = tpu.concatenate %387, %388, %389, %390 in 0 : vector<1x128xf32>, vector<1x128xf32>, vector<1x128xf32>, vector<1x128xf32> -> vector<4x128xf32>
    %cst_61 = arith.constant dense<0.000000e+00> : vector<4x128xf32>
    %392 = tpu.matmul %377, %85, %cst_61 {dimension_numbers = #tpu.dot_dimension_numbers<[1], [0], [0], [1], [0, 0, 1, 1], [], []>} : vector<4x16xf32>, vector<16x128xf32>, vector<4x128xf32> -> vector<4x128xf32>
    %393 = arith.addf %391, %392 : vector<4x128xf32>
    %394 = vector.extract_strided_slice %393 {offsets = [0, 0], sizes = [2, 64], strides = [1, 1]} : vector<4x128xf32> to vector<2x64xf32>
    %395 = vector.extract_strided_slice %393 {offsets = [2, 64], sizes = [2, 64], strides = [1, 1]} : vector<4x128xf32> to vector<2x64xf32>
    %396 = tpu.concatenate %394, %395 in 0 : vector<2x64xf32>, vector<2x64xf32> -> vector<4x64xf32>
    %397 = vector.extract_strided_slice %396 {offsets = [0, 0], sizes = [4, 48], strides = [1, 1]} : vector<4x64xf32> to vector<4x48xf32>
    %398 = arith.negf %397 : vector<4x48xf32>
    %399 = math.exp %398 : vector<4x48xf32>
    %cst_62 = arith.constant 1.000000e+00 : f32
    %400 = vector.broadcast %cst_62 : f32 to vector<4x48xf32>
    %401 = arith.addf %400, %399 : vector<4x48xf32>
    %402 = arith.divf %400, %401 : vector<4x48xf32>
    %403 = vector.extract_strided_slice %396 {offsets = [0, 48], sizes = [4, 16], strides = [1, 1]} : vector<4x64xf32> to vector<4x16xf32>
    %404 = math.tanh %403 : vector<4x16xf32>
    %405 = vector.extract_strided_slice %402 {offsets = [0, 0], sizes = [4, 16], strides = [1, 1]} : vector<4x48xf32> to vector<4x16xf32>
    %406 = vector.extract_strided_slice %402 {offsets = [0, 16], sizes = [4, 16], strides = [1, 1]} : vector<4x48xf32> to vector<4x16xf32>
    %407 = vector.extract_strided_slice %402 {offsets = [0, 32], sizes = [4, 16], strides = [1, 1]} : vector<4x48xf32> to vector<4x16xf32>
    %408 = arith.mulf %406, %380 : vector<4x16xf32>
    %409 = arith.mulf %405, %404 : vector<4x16xf32>
    %410 = arith.addf %408, %409 : vector<4x16xf32>
    %411 = math.tanh %410 : vector<4x16xf32>
    %412 = arith.mulf %407, %411 : vector<4x16xf32>
    %c7_i32_63 = arith.constant 7 : i32
    %413 = vector.broadcast %c7_i32_63 : i32 to vector<2x1xi32>
    %c0_i32_64 = arith.constant 0 : i32
    %414 = vector.broadcast %c0_i32_64 : i32 to vector<2x1xi32>
    %415 = tpu.concatenate %413, %414 in 0 : vector<2x1xi32>, vector<2x1xi32> -> vector<4x1xi32>
    %416 = arith.cmpi sgt, %90, %415 : vector<4x1xi32>
    %cst_65 = arith.constant 0.000000e+00 : f32
    %417 = vector.shape_cast %416 : vector<4x1xi1> to vector<4x1xi1>
    %418 = vector.broadcast %417 : vector<4x1xi1> to vector<4x16xi1>
    %419 = vector.broadcast %cst_65 : f32 to vector<4x16xf32>
    %420 = arith.select %418, %412, %419 : vector<4x16xi1>, vector<4x16xf32>
    %421 = vector.extract_strided_slice %420 {offsets = [0, 0], sizes = [2, 16], strides = [1, 1]} : vector<4x16xf32> to vector<2x16xf32>
    %422 = vector.extract_strided_slice %420 {offsets = [2, 0], sizes = [2, 16], strides = [1, 1]} : vector<4x16xf32> to vector<2x16xf32>
    %423 = vector.extract_strided_slice %133 {offsets = [0, 0], sizes = [1, 16], strides = [1, 1]} : vector<2x16xf32> to vector<1x16xf32>
    %424 = vector.extract_strided_slice %175 {offsets = [0, 0], sizes = [1, 16], strides = [1, 1]} : vector<2x16xf32> to vector<1x16xf32>
    %425 = vector.extract_strided_slice %217 {offsets = [0, 0], sizes = [1, 16], strides = [1, 1]} : vector<2x16xf32> to vector<1x16xf32>
    %426 = vector.extract_strided_slice %259 {offsets = [0, 0], sizes = [1, 16], strides = [1, 1]} : vector<2x16xf32> to vector<1x16xf32>
    %427 = vector.extract_strided_slice %301 {offsets = [0, 0], sizes = [1, 16], strides = [1, 1]} : vector<2x16xf32> to vector<1x16xf32>
    %428 = vector.extract_strided_slice %343 {offsets = [0, 0], sizes = [1, 16], strides = [1, 1]} : vector<2x16xf32> to vector<1x16xf32>
    %429 = vector.extract_strided_slice %385 {offsets = [0, 0], sizes = [1, 16], strides = [1, 1]} : vector<2x16xf32> to vector<1x16xf32>
    %430 = vector.extract_strided_slice %421 {offsets = [0, 0], sizes = [1, 16], strides = [1, 1]} : vector<2x16xf32> to vector<1x16xf32>
    %431 = tpu.concatenate %423, %424, %425, %426, %427, %428, %429, %430 in 0 : vector<1x16xf32>, vector<1x16xf32>, vector<1x16xf32>, vector<1x16xf32>, vector<1x16xf32>, vector<1x16xf32>, vector<1x16xf32>, vector<1x16xf32> -> vector<8x16xf32>
    %432 = vector.extract_strided_slice %422 {offsets = [0, 0], sizes = [1, 16], strides = [1, 1]} : vector<2x16xf32> to vector<1x16xf32>
    %433 = vector.extract_strided_slice %386 {offsets = [0, 0], sizes = [1, 16], strides = [1, 1]} : vector<2x16xf32> to vector<1x16xf32>
    %434 = vector.extract_strided_slice %344 {offsets = [0, 0], sizes = [1, 16], strides = [1, 1]} : vector<2x16xf32> to vector<1x16xf32>
    %435 = vector.extract_strided_slice %302 {offsets = [0, 0], sizes = [1, 16], strides = [1, 1]} : vector<2x16xf32> to vector<1x16xf32>
    %436 = vector.extract_strided_slice %260 {offsets = [0, 0], sizes = [1, 16], strides = [1, 1]} : vector<2x16xf32> to vector<1x16xf32>
    %437 = vector.extract_strided_slice %218 {offsets = [0, 0], sizes = [1, 16], strides = [1, 1]} : vector<2x16xf32> to vector<1x16xf32>
    %438 = vector.extract_strided_slice %176 {offsets = [0, 0], sizes = [1, 16], strides = [1, 1]} : vector<2x16xf32> to vector<1x16xf32>
    %439 = vector.extract_strided_slice %134 {offsets = [0, 0], sizes = [1, 16], strides = [1, 1]} : vector<2x16xf32> to vector<1x16xf32>
    %440 = tpu.concatenate %432, %433, %434, %435, %436, %437, %438, %439 in 0 : vector<1x16xf32>, vector<1x16xf32>, vector<1x16xf32>, vector<1x16xf32>, vector<1x16xf32>, vector<1x16xf32>, vector<1x16xf32>, vector<1x16xf32> -> vector<8x16xf32>
    %441 = tpu.concatenate %431, %440 in 1 : vector<8x16xf32>, vector<8x16xf32> -> vector<8x32xf32>
    %442 = vector.extract_strided_slice %133 {offsets = [1, 0], sizes = [1, 16], strides = [1, 1]} : vector<2x16xf32> to vector<1x16xf32>
    %443 = vector.extract_strided_slice %175 {offsets = [1, 0], sizes = [1, 16], strides = [1, 1]} : vector<2x16xf32> to vector<1x16xf32>
    %444 = vector.extract_strided_slice %217 {offsets = [1, 0], sizes = [1, 16], strides = [1, 1]} : vector<2x16xf32> to vector<1x16xf32>
    %445 = vector.extract_strided_slice %259 {offsets = [1, 0], sizes = [1, 16], strides = [1, 1]} : vector<2x16xf32> to vector<1x16xf32>
    %446 = vector.extract_strided_slice %301 {offsets = [1, 0], sizes = [1, 16], strides = [1, 1]} : vector<2x16xf32> to vector<1x16xf32>
    %447 = vector.extract_strided_slice %343 {offsets = [1, 0], sizes = [1, 16], strides = [1, 1]} : vector<2x16xf32> to vector<1x16xf32>
    %448 = vector.extract_strided_slice %385 {offsets = [1, 0], sizes = [1, 16], strides = [1, 1]} : vector<2x16xf32> to vector<1x16xf32>
    %449 = vector.extract_strided_slice %421 {offsets = [1, 0], sizes = [1, 16], strides = [1, 1]} : vector<2x16xf32> to vector<1x16xf32>
    %450 = tpu.concatenate %442, %443, %444, %445, %446, %447, %448, %449 in 0 : vector<1x16xf32>, vector<1x16xf32>, vector<1x16xf32>, vector<1x16xf32>, vector<1x16xf32>, vector<1x16xf32>, vector<1x16xf32>, vector<1x16xf32> -> vector<8x16xf32>
    %451 = vector.extract_strided_slice %422 {offsets = [1, 0], sizes = [1, 16], strides = [1, 1]} : vector<2x16xf32> to vector<1x16xf32>
    %452 = vector.extract_strided_slice %386 {offsets = [1, 0], sizes = [1, 16], strides = [1, 1]} : vector<2x16xf32> to vector<1x16xf32>
    %453 = vector.extract_strided_slice %344 {offsets = [1, 0], sizes = [1, 16], strides = [1, 1]} : vector<2x16xf32> to vector<1x16xf32>
    %454 = vector.extract_strided_slice %302 {offsets = [1, 0], sizes = [1, 16], strides = [1, 1]} : vector<2x16xf32> to vector<1x16xf32>
    %455 = vector.extract_strided_slice %260 {offsets = [1, 0], sizes = [1, 16], strides = [1, 1]} : vector<2x16xf32> to vector<1x16xf32>
    %456 = vector.extract_strided_slice %218 {offsets = [1, 0], sizes = [1, 16], strides = [1, 1]} : vector<2x16xf32> to vector<1x16xf32>
    %457 = vector.extract_strided_slice %176 {offsets = [1, 0], sizes = [1, 16], strides = [1, 1]} : vector<2x16xf32> to vector<1x16xf32>
    %458 = vector.extract_strided_slice %134 {offsets = [1, 0], sizes = [1, 16], strides = [1, 1]} : vector<2x16xf32> to vector<1x16xf32>
    %459 = tpu.concatenate %451, %452, %453, %454, %455, %456, %457, %458 in 0 : vector<1x16xf32>, vector<1x16xf32>, vector<1x16xf32>, vector<1x16xf32>, vector<1x16xf32>, vector<1x16xf32>, vector<1x16xf32>, vector<1x16xf32> -> vector<8x16xf32>
    %460 = tpu.concatenate %450, %459 in 1 : vector<8x16xf32>, vector<8x16xf32> -> vector<8x32xf32>
    %461 = tpu.concatenate %441, %460 in 0 : vector<8x32xf32>, vector<8x32xf32> -> vector<16x32xf32>
    %c0_66 = arith.constant 0 : index
    %c0_67 = arith.constant 0 : index
    %462 = vector.load %arg8[%c0_66, %c0_67] : memref<32x32xf32, #tpu.memory_space<vmem>>, vector<32x32xf32>
    %cst_68 = arith.constant dense<0.000000e+00> : vector<16x32xf32>
    %463 = tpu.matmul %461, %462, %cst_68 {dimension_numbers = #tpu.dot_dimension_numbers<[1], [0], [0], [1], [0, 0, 1, 1], [], []>} : vector<16x32xf32>, vector<32x32xf32>, vector<16x32xf32> -> vector<16x32xf32>
    %c0_69 = arith.constant 0 : index
    %c0_70 = arith.constant 0 : index
    %464 = vector.load %arg9[%c0_69, %c0_70] : memref<1x32xf32, #tpu.memory_space<vmem>>, vector<1x32xf32>
    %465 = vector.broadcast %464 : vector<1x32xf32> to vector<16x32xf32>
    %466 = arith.addf %463, %465 : vector<16x32xf32>
    %cst_71 = arith.constant 0.000000e+00 : f32
    %467 = vector.broadcast %cst_71 : f32 to vector<16x32xf32>
    %468 = arith.maximumf %466, %467 : vector<16x32xf32>
    %c0_72 = arith.constant 0 : index
    %c0_73 = arith.constant 0 : index
    %469 = vector.load %arg10[%c0_72, %c0_73] : memref<16x32xf32, #tpu.memory_space<vmem>>, vector<16x32xf32>
    tpu.vector_store %arg10[%c0_72, %c0_73], %468 {strides = array<i32>} : memref<16x32xf32, #tpu.memory_space<vmem>>, vector<16x32xf32>,
    return
  }
  func.func @transform_0(%arg0: i32, %arg1: memref<2xi32, #tpu.memory_space<smem>>) -> (i32, i32) {
    %c0_i32 = arith.constant 0 : i32
    %c0_i32_0 = arith.constant 0 : i32
    %c0_i32_1 = arith.constant 0 : i32
    return %c0_i32, %c0_i32_0 : i32, i32
  }
  func.func @transform_1(%arg0: i32, %arg1: memref<2xi32, #tpu.memory_space<smem>>) -> (i32, i32, i32) {
    %c0_i32 = arith.constant 0 : i32
    %c0_i32_0 = arith.constant 0 : i32
    %c0_i32_1 = arith.constant 0 : i32
    %c0_i32_2 = arith.constant 0 : i32
    return %c0_i32, %c0_i32_0, %c0_i32_1 : i32, i32, i32
  }
  func.func @transform_2(%arg0: i32, %arg1: memref<2xi32, #tpu.memory_space<smem>>) -> (i32, i32, i32) {
    %c0_i32 = arith.constant 0 : i32
    %c0_i32_0 = arith.constant 0 : i32
    %c0_i32_1 = arith.constant 0 : i32
    %c0_i32_2 = arith.constant 0 : i32
    return %c0_i32, %c0_i32_0, %c0_i32_1 : i32, i32, i32
  }
  func.func @transform_3(%arg0: i32, %arg1: memref<2xi32, #tpu.memory_space<smem>>) -> (i32, i32) {
    %c0_i32 = arith.constant 0 : i32
    %c0_i32_0 = arith.constant 0 : i32
    %c0_i32_1 = arith.constant 0 : i32
    return %c0_i32, %c0_i32_0 : i32, i32
  }
  func.func @transform_4(%arg0: i32, %arg1: memref<2xi32, #tpu.memory_space<smem>>) -> (i32, i32) {
    %c0_i32 = arith.constant 0 : i32
    %c0_i32_0 = arith.constant 0 : i32
    %c0_i32_1 = arith.constant 0 : i32
    return %c0_i32, %c0_i32_0 : i32, i32
  }
  func.func @transform_5(%arg0: i32, %arg1: memref<2xi32, #tpu.memory_space<smem>>) -> (i32, i32) {
    %c0_i32 = arith.constant 0 : i32
    %c0_i32_0 = arith.constant 0 : i32
    %c0_i32_1 = arith.constant 0 : i32
    return %c0_i32, %c0_i32_0 : i32, i32
  }
  func.func @transform_6(%arg0: i32, %arg1: memref<2xi32, #tpu.memory_space<smem>>) -> (i32, i32) {
    %c0_i32 = arith.constant 0 : i32
    %c0_i32_0 = arith.constant 0 : i32
    %c0_i32_1 = arith.constant 0 : i32
    return %c0_i32, %c0_i32_0 : i32, i32
  }
  func.func @transform_7(%arg0: i32, %arg1: memref<2xi32, #tpu.memory_space<smem>>) -> (i32, i32) {
    %c0_i32 = arith.constant 0 : i32
    %c0_i32_0 = arith.constant 0 : i32
    %c0_i32_1 = arith.constant 0 : i32
    return %c0_i32, %c0_i32_0 : i32, i32
  }
  func.func @transform_8(%arg0: i32, %arg1: memref<2xi32, #tpu.memory_space<smem>>) -> (i32, i32) {
    %c0_i32 = arith.constant 0 : i32
    %c0_i32_0 = arith.constant 0 : i32
    %c0_i32_1 = arith.constant 0 : i32
    return %c0_i32, %c0_i32_0 : i32, i32
  }
}

</mosaic_0001>

<llo_original>
// kernel: tpu_custom_call.1
$region0: #{tpu_custom_call.1}
  #allocation0 [shape = 'u32[]', space=smem, size = 0x4, offset = 0x4, fixed_abs, tag = 'smem constant byte address 0x4 - core index']
  #allocation1 [shape = 'u32[144,128]{1,0:T(1,128)}', space=vmem, size = 0x12000, scoped, tag = 'internal scratch']
  #allocation2 [shape = 's32[1]{0}', space=sflag, size = 0x4, scoped, tag = 'scoped memory for tpu_custom_call.1']
  #allocation3 [shape = 'u8[512]{0}', space=smem, size = 0x200, scoped, tag = 'prefetched SMEM operand 0']
  %s0 = inlined_call_operand.vmem [shape: s32[2], index: 0, kind: input, shape index: {}]
  %s1 = inlined_call_operand.vmem [shape: f32[16,32], index: 1, kind: input, shape index: {}]
  %s2 = inlined_call_operand.vmem [shape: f32[3,160,32], index: 2, kind: input, shape index: {}]
  %s3 = inlined_call_operand.vmem [shape: f32[3,1,32], index: 3, kind: input, shape index: {}]
  %s4 = inlined_call_operand.vmem [shape: f32[32,128], index: 4, kind: input, shape index: {}]
  %s5 = inlined_call_operand.vmem [shape: f32[16,128], index: 5, kind: input, shape index: {}]
  %s6 = inlined_call_operand.vmem [shape: f32[1,128], index: 6, kind: input, shape index: {}]
  %s7 = inlined_call_operand.vmem [shape: f32[32,32], index: 7, kind: input, shape index: {}]
  %s8 = inlined_call_operand.vmem [shape: f32[1,32], index: 8, kind: input, shape index: {}]
  %s9 = inlined_call_operand.hbm [shape: f32[16,32], index: 9, kind: output, shape index: {}]
  %s10 = sld [smem:[#allocation0]]
  $region42: #{tpu_custom_call.1} parent=0
    _
  %s12 = ssub.s32 1, %s10
  %s13 = scalar_select 0, %s12, %s10
  %s14 = sshll.u32 %s0, 4
  %s15 = int_to_ptr.vmem [resolvable:$true] %s14
  %17 = dma.vmem_to_smem %s15, 16, [#allocation3], [#allocation2]
  %18 = dma.done [#allocation2], 16
  %19 = sfence
  $region1: #{tpu_custom_call.1} parent=0
    #allocation4 [shape = 'u8[8192]{0}', space=vmem, size = 0x2000, scoped, tag = 'output window, operand 0, single buffered']
    #allocation5 [shape = 's32[1]{0}', space=sflag, size = 0x4, scoped, tag = 'scoped memory for tpu_custom_call.1']
    %20 = vsyncpa [#allocation5], 0
    // Predicated region
    $region2: #{tpu_custom_call.1} parent=1 // pred_check
      _
    $region3: #{tpu_custom_call.1} parent=1 // pred_check_branch
      %22 = sbr.rel (0) target = $region5
    $region4: #{tpu_custom_call.1} parent=1 // pred_region
      _
    $region5: #{tpu_custom_call.1} parent=1 // pred_fallthru
      _
    // Predicated region
    $region6: #{tpu_custom_call.1} parent=1 // pred_check
      _
    $region7: #{tpu_custom_call.1} parent=1 // pred_check_branch
      %24 = sbr.rel (0) target = $region9
    $region8: #{tpu_custom_call.1} parent=1 // pred_region
      _
    $region9: #{tpu_custom_call.1} parent=1 // pred_fallthru
      _
    // Predicated region
    $region10: #{tpu_custom_call.1} parent=1 // pred_check
      _
    $region11: #{tpu_custom_call.1} parent=1 // pred_check_branch
      %26 = sbr.rel (0) target = $region13
    $region12: #{tpu_custom_call.1} parent=1 // pred_region
      _
    $region13: #{tpu_custom_call.1} parent=1 // pred_fallthru
      _
    // Predicated region
    $region14: #{tpu_custom_call.1} parent=1 // pred_check
      _
    $region15: #{tpu_custom_call.1} parent=1 // pred_check_branch
      %28 = sbr.rel (0) target = $region17
    $region16: #{tpu_custom_call.1} parent=1 // pred_region
      _
    $region17: #{tpu_custom_call.1} parent=1 // pred_fallthru
      _
    // Predicated region
    $region18: #{tpu_custom_call.1} parent=1 // pred_check
      _
    $region19: #{tpu_custom_call.1} parent=1 // pred_check_branch
      %30 = sbr.rel (0) target = $region21
    $region20: #{tpu_custom_call.1} parent=1 // pred_region
      _
    $region21: #{tpu_custom_call.1} parent=1 // pred_fallthru
      _
    // Predicated region
    $region22: #{tpu_custom_call.1} parent=1 // pred_check
      _
    $region23: #{tpu_custom_call.1} parent=1 // pred_check_branch
      %32 = sbr.rel (0) target = $region25
    $region24: #{tpu_custom_call.1} parent=1 // pred_region
      _
    $region25: #{tpu_custom_call.1} parent=1 // pred_fallthru
      _
    // Predicated region
    $region26: #{tpu_custom_call.1} parent=1 // pred_check
      _
    $region27: #{tpu_custom_call.1} parent=1 // pred_check_branch
      %34 = sbr.rel (0) target = $region29
    $region28: #{tpu_custom_call.1} parent=1 // pred_region
      _
    $region29: #{tpu_custom_call.1} parent=1 // pred_fallthru
      _
    // Predicated region
    $region30: #{tpu_custom_call.1} parent=1 // pred_check
      _
    $region31: #{tpu_custom_call.1} parent=1 // pred_check_branch
      %36 = sbr.rel (0) target = $region33
    $region32: #{tpu_custom_call.1} parent=1 // pred_region
      _
    $region33: #{tpu_custom_call.1} parent=1 // pred_fallthru
      _
    %v37 = vld [vmem:[%s1] sm:$0xff]
    %v38 = vld [vmem:[%s1 + $0x8] sm:$0xff]
    %v40 = vrot.slane %v37, 6
    %vm42 = vcmask 1041408
    %v43 = vsel %vm42, 0.0, %v40
    %v44 = vsel %vm42, %v40, 0.0
    %vm47 = vcmask 1046528
    %v48 = vrot.slane %v43, 1
    %v49 = vrot.slane %v44, 1
    %v50 = vsel %vm47, %v48, %v49
    %51 = vrot.lane.b32.xlu0 %v50, 32
    %v52 = vpop.permute.xlu0 %51
    %vm54 = vcmask 1045504
    %v55 = vrot.slane %v43, 2
    %v56 = vrot.slane %v44, 2
    %v57 = vsel %vm54, %v55, %v56
    %58 = vrot.lane.b32.xlu0 %v57, 64
    %v59 = vpop.permute.xlu0 %58
    %vm61 = vcmask 1044480
    %v62 = vrot.slane %v43, 3
    %v63 = vrot.slane %v44, 3
    %v64 = vsel %vm61, %v62, %v63
    %65 = vrot.lane.b32.xlu0 %v64, 96
    %v66 = vpop.permute.xlu0 %65
    %vm68 = vcmask 1043456
    %v69 = vrot.slane %v43, 4
    %v70 = vrot.slane %v44, 4
    %v71 = vsel %vm68, %v69, %v70
    %vm72 = vcmask 261120
    %v73 = vsel %vm72, %v43, %v52
    %vm74 = vcmask 523264
    %v75 = vsel %vm74, %v73, %v59
    %vm76 = vcmask 785408
    %v77 = vsel %vm76, %v75, %v66
    %v79 = vrot.slane %v38, 6
    %v81 = vsel %vm42, 0.0, %v79
    %v82 = vsel %vm42, %v79, 0.0
    %v85 = vrot.slane %v81, 1
    %v86 = vrot.slane %v82, 1
    %v87 = vsel %vm47, %v85, %v86
    %88 = vrot.lane.b32.xlu0 %v87, 32
    %v89 = vpop.permute.xlu0 %88
    %v91 = vrot.slane %v81, 2
    %v92 = vrot.slane %v82, 2
    %v93 = vsel %vm54, %v91, %v92
    %94 = vrot.lane.b32.xlu0 %v93, 64
    %v95 = vpop.permute.xlu0 %94
    %v97 = vrot.slane %v81, 3
    %v98 = vrot.slane %v82, 3
    %v99 = vsel %vm61, %v97, %v98
    %100 = vrot.lane.b32.xlu0 %v99, 96
    %v101 = vpop.permute.xlu0 %100
    %v103 = vrot.slane %v81, 4
    %v104 = vrot.slane %v82, 4
    %v105 = vsel %vm68, %v103, %v104
    %v106 = vsel %vm72, %v81, %v89
    %v107 = vsel %vm74, %v106, %v95
    %v108 = vsel %vm76, %v107, %v101
    %v109 = vld [vmem:[%s2] sm:$0xff]
    %v110 = vld [vmem:[%s2 + $0x8] sm:$0xff]
    %v111 = vld [vmem:[%s2 + $0x10] sm:$0xff]
    %v112 = vld [vmem:[%s2 + $0x18] sm:$0xff]
    %v113 = vld [vmem:[%s2 + $0x20] sm:$0xff]
    %v114 = vld [vmem:[%s2 + $0x28] sm:$0xff]
    %v115 = vld [vmem:[%s2 + $0x30] sm:$0xff]
    %v116 = vld [vmem:[%s2 + $0x38] sm:$0xff]
    %v117 = vld [vmem:[%s2 + $0x40] sm:$0xff]
    %v118 = vld [vmem:[%s2 + $0x48] sm:$0xff]
    %v119 = vld [vmem:[%s2 + $0x50] sm:$0xff]
    %v120 = vld [vmem:[%s2 + $0x58] sm:$0xff]
    %v121 = vld [vmem:[%s2 + $0x60] sm:$0xff]
    %v122 = vld [vmem:[%s2 + $0x68] sm:$0xff]
    %v123 = vld [vmem:[%s2 + $0x70] sm:$0xff]
    %v124 = vld [vmem:[%s2 + $0x78] sm:$0xff]
    %v125 = vld [vmem:[%s2 + $0x80] sm:$0xff]
    %v126 = vld [vmem:[%s2 + $0x88] sm:$0xff]
    %v127 = vld [vmem:[%s2 + $0x90] sm:$0xff]
    %v128 = vld [vmem:[%s2 + $0x98] sm:$0xff]
    %v129 = vld [vmem:[%s3] sm:$0x1]
    %v131 = vlaneseq
    %v132 = vshrl.u32 %v131, 7
    %v133 = vsub.s32 0, %v132
    %v134 = vrot.slane %v129, %v133
    %v136 = vsel %vm72, %v71, 0
    %v138 = vsel %vm72, %v105, 0
    %140 = vmatprep.subr.mxu0 0.0
    %141 = vmatpush1.msra.mxu0 %v124
    %142 = vmatprep.subr.mxu0 0.0
    %143 = vmatpush1.msra.mxu0 %v123
    %144 = vmatprep.subr.mxu0 0.0
    %145 = vmatpush1.msra.mxu0 %v122
    %146 = vmatprep.subr.mxu0 0.0
    %147 = vmatpush1.msra.mxu0 %v121
    %148 = vmatprep.subr.mxu0 0.0
    %149 = vmatpush1.msra.mxu0 %v120
    %150 = vmatprep.subr.mxu0 0.0
    %151 = vmatpush1.msra.mxu0 %v119
    %152 = vmatprep.subr.mxu0 0.0
    %153 = vmatpush1.msra.mxu0 %v118
    %154 = vmatprep.subr.mxu0 0.0
    %155 = vmatpush1.msra.mxu0 %v117
    %156 = vmatprep.subr.mxu0 0.0
    %157 = vmatpush1.msra.mxu0 %v116
    %158 = vmatprep.subr.mxu0 0.0
    %159 = vmatpush1.msra.mxu0 %v115
    %160 = vmatprep.subr.mxu0 0.0
    %161 = vmatpush1.msra.mxu0 %v114
    %162 = vmatprep.subr.mxu0 0.0
    %163 = vmatpush1.msra.mxu0 %v113
    %164 = vmatprep.subr.mxu0 0.0
    %165 = vmatpush1.msra.mxu0 %v112
    %166 = vmatprep.subr.mxu0 0.0
    %167 = vmatpush1.msra.mxu0 %v111
    %168 = vmatprep.subr.mxu0 0.0
    %169 = vmatpush1.msra.mxu0 %v110
    %170 = vmatprep.subr.mxu0 0.0
    %171 = vmatpush1.msra.mxu0 %v109
    %172 = vmatprep.subr.mxu0 0.0
    %173 = vmatpush2.msra.mxu0 0.0
    %174 = vmatprep.subr.mxu0 0.0
    %175 = vmatpush2.msra.mxu0 0.0
    %176 = vmatprep.subr.mxu0 0.0
    %177 = vmatpush2.msra.mxu0 0.0
    %178 = vmatprep.subr.mxu0 0.0
    %179 = vmatpush2.msra.mxu0 0.0
    %180 = vmatprep.subr.mxu0 0.0
    %181 = vmatpush2.msra.mxu0 0.0
    %182 = vmatprep.subr.mxu0 0.0
    %183 = vmatpush2.msra.mxu0 0.0
    %184 = vmatprep.subr.mxu0 0.0
    %185 = vmatpush2.msra.mxu0 0.0
    %186 = vmatprep.subr.mxu0 0.0
    %187 = vmatpush2.msra.mxu0 0.0
    %188 = vmatprep.subr.mxu0 0.0
    %189 = vmatpush2.msra.mxu0 0.0
    %190 = vmatprep.subr.mxu0 0.0
    %191 = vmatpush2.msra.mxu0 0.0
    %192 = vmatprep.subr.mxu0 0.0
    %193 = vmatpush2.msra.mxu0 0.0
    %194 = vmatprep.subr.mxu0 0.0
    %195 = vmatpush2.msra.mxu0 0.0
    %196 = vmatprep.subr.mxu0 0.0
    %197 = vmatpush2.msra.mxu0 %v128
    %198 = vmatprep.subr.mxu0 0.0
    %199 = vmatpush2.msra.mxu0 %v127
    %200 = vmatprep.subr.mxu0 0.0
    %201 = vmatpush2.msra.mxu0 %v126
    %202 = vmatprep.subr.mxu0 0.0
    %203 = vmatpush2.msra.mxu0 %v125
    %204 = vmatprep.mubr.f32.mxu0 %v136
    %205 = vmatmul.mubr.f32.gmra.mxu0 %v77
    %v206 = vpop.f32.mrf.mxu0
    %v207 = vadd.f32 %v134, %v206
    %v208 = vpop.f32.mrf.mxu0
    %209 = vmatprep.mubr.f32.mxu0 %v138
    %210 = vmatmul.mubr.f32.gmra.mxu0 %v108
    %v211 = vpop.f32.mrf.mxu0
    %v212 = vadd.f32 %v134, %v211
    %v213 = vpop.f32.mrf.mxu0
    %214 = vdwg.mxu0
    %v215 = vmax.f32 %v207, 0.0
    %v216 = vmax.f32 %v212, 0.0
    %v218 = vrot.slane %v215, 6
    %v220 = vsel %vm42, 0.0, %v218
    %v221 = vsel %vm42, %v218, 0.0
    %v224 = vrot.slane %v220, 1
    %v225 = vrot.slane %v221, 1
    %v226 = vsel %vm47, %v224, %v225
    %227 = vrot.lane.b32.xlu0 %v226, 32
    %v228 = vpop.permute.xlu0 %227
    %v230 = vrot.slane %v220, 2
    %v231 = vrot.slane %v221, 2
    %v232 = vsel %vm54, %v230, %v231
    %233 = vrot.lane.b32.xlu0 %v232, 64
    %v234 = vpop.permute.xlu0 %233
    %v236 = vrot.slane %v220, 3
    %v237 = vrot.slane %v221, 3
    %v238 = vsel %vm61, %v236, %v237
    %239 = vrot.lane.b32.xlu0 %v238, 96
    %v240 = vpop.permute.xlu0 %239
    %v242 = vrot.slane %v220, 4
    %v243 = vrot.slane %v221, 4
    %v244 = vsel %vm68, %v242, %v243
    %v245 = vsel %vm72, %v220, %v228
    %v246 = vsel %vm74, %v245, %v234
    %v247 = vsel %vm76, %v246, %v240
    %v249 = vrot.slane %v216, 6
    %v251 = vsel %vm42, 0.0, %v249
    %v252 = vsel %vm42, %v249, 0.0
    %v255 = vrot.slane %v251, 1
    %v256 = vrot.slane %v252, 1
    %v257 = vsel %vm47, %v255, %v256
    %258 = vrot.lane.b32.xlu0 %v257, 32
    %v259 = vpop.permute.xlu0 %258
    %v261 = vrot.slane %v251, 2
    %v262 = vrot.slane %v252, 2
    %v263 = vsel %vm54, %v261, %v262
    %264 = vrot.lane.b32.xlu0 %v263, 64
    %v265 = vpop.permute.xlu0 %264
    %v267 = vrot.slane %v251, 3
    %v268 = vrot.slane %v252, 3
    %v269 = vsel %vm61, %v267, %v268
    %270 = vrot.lane.b32.xlu0 %v269, 96
    %v271 = vpop.permute.xlu0 %270
    %v273 = vrot.slane %v251, 4
    %v274 = vrot.slane %v252, 4
    %v275 = vsel %vm68, %v273, %v274
    %v276 = vsel %vm72, %v251, %v259
    %v277 = vsel %vm74, %v276, %v265
    %v278 = vsel %vm76, %v277, %v271
    %s279 = scalar_lea.vmem %s2, 160
    %v280 = vld [vmem:[%s279] sm:$0xff]
    %v281 = vld [vmem:[%s279 + $0x8] sm:$0xff]
    %v282 = vld [vmem:[%s279 + $0x10] sm:$0xff]
    %v283 = vld [vmem:[%s279 + $0x18] sm:$0xff]
    %v284 = vld [vmem:[%s279 + $0x20] sm:$0xff]
    %v285 = vld [vmem:[%s279 + $0x28] sm:$0xff]
    %v286 = vld [vmem:[%s279 + $0x30] sm:$0xff]
    %v287 = vld [vmem:[%s279 + $0x38] sm:$0xff]
    %v288 = vld [vmem:[%s279 + $0x40] sm:$0xff]
    %v289 = vld [vmem:[%s279 + $0x48] sm:$0xff]
    %v290 = vld [vmem:[%s279 + $0x50] sm:$0xff]
    %v291 = vld [vmem:[%s279 + $0x58] sm:$0xff]
    %v292 = vld [vmem:[%s279 + $0x60] sm:$0xff]
    %v293 = vld [vmem:[%s279 + $0x68] sm:$0xff]
    %v294 = vld [vmem:[%s279 + $0x70] sm:$0xff]
    %v295 = vld [vmem:[%s279 + $0x78] sm:$0xff]
    %v296 = vld [vmem:[%s279 + $0x80] sm:$0xff]
    %v297 = vld [vmem:[%s279 + $0x88] sm:$0xff]
    %v298 = vld [vmem:[%s279 + $0x90] sm:$0xff]
    %v299 = vld [vmem:[%s279 + $0x98] sm:$0xff]
    %s300 = scalar_lea.vmem %s3, 1
    %v301 = vld [vmem:[%s300] sm:$0x1]
    %v303 = vlaneseq
    %v304 = vshrl.u32 %v303, 7
    %v305 = vsub.s32 0, %v304
    %v306 = vrot.slane %v301, %v305
    %v308 = vsel %vm72, %v244, 0
    %v310 = vsel %vm72, %v275, 0
    %312 = vmatprep.subr.mxu0 0.0
    %313 = vmatpush1.msra.mxu0 %v295
    %314 = vmatprep.subr.mxu0 0.0
    %315 = vmatpush1.msra.mxu0 %v294
    %316 = vmatprep.subr.mxu0 0.0
    %317 = vmatpush1.msra.mxu0 %v293
    %318 = vmatprep.subr.mxu0 0.0
    %319 = vmatpush1.msra.mxu0 %v292
    %320 = vmatprep.subr.mxu0 0.0
    %321 = vmatpush1.msra.mxu0 %v291
    %322 = vmatprep.subr.mxu0 0.0
    %323 = vmatpush1.msra.mxu0 %v290
    %324 = vmatprep.subr.mxu0 0.0
    %325 = vmatpush1.msra.mxu0 %v289
    %326 = vmatprep.subr.mxu0 0.0
    %327 = vmatpush1.msra.mxu0 %v288
    %328 = vmatprep.subr.mxu0 0.0
    %329 = vmatpush1.msra.mxu0 %v287
    %330 = vmatprep.subr.mxu0 0.0
    %331 = vmatpush1.msra.mxu0 %v286
    %332 = vmatprep.subr.mxu0 0.0
    %333 = vmatpush1.msra.mxu0 %v285
    %334 = vmatprep.subr.mxu0 0.0
    %335 = vmatpush1.msra.mxu0 %v284
    %336 = vmatprep.subr.mxu0 0.0
    %337 = vmatpush1.msra.mxu0 %v283
    %338 = vmatprep.subr.mxu0 0.0
    %339 = vmatpush1.msra.mxu0 %v282
    %340 = vmatprep.subr.mxu0 0.0
    %341 = vmatpush1.msra.mxu0 %v281
    %342 = vmatprep.subr.mxu0 0.0
    %343 = vmatpush1.msra.mxu0 %v280
    %344 = vmatprep.subr.mxu0 0.0
    %345 = vmatpush2.msra.mxu0 0.0
    %346 = vmatprep.subr.mxu0 0.0
    %347 = vmatpush2.msra.mxu0 0.0
    %348 = vmatprep.subr.mxu0 0.0
    %349 = vmatpush2.msra.mxu0 0.0
    %350 = vmatprep.subr.mxu0 0.0
    %351 = vmatpush2.msra.mxu0 0.0
    %352 = vmatprep.subr.mxu0 0.0
    %353 = vmatpush2.msra.mxu0 0.0
    %354 = vmatprep.subr.mxu0 0.0
    %355 = vmatpush2.msra.mxu0 0.0
    %356 = vmatprep.subr.mxu0 0.0
    %357 = vmatpush2.msra.mxu0 0.0
    %358 = vmatprep.subr.mxu0 0.0
    %359 = vmatpush2.msra.mxu0 0.0
    %360 = vmatprep.subr.mxu0 0.0
    %361 = vmatpush2.msra.mxu0 0.0
    %362 = vmatprep.subr.mxu0 0.0
    %363 = vmatpush2.msra.mxu0 0.0
    %364 = vmatprep.subr.mxu0 0.0
    %365 = vmatpush2.msra.mxu0 0.0
    %366 = vmatprep.subr.mxu0 0.0
    %367 = vmatpush2.msra.mxu0 0.0
    %368 = vmatprep.subr.mxu0 0.0
    %369 = vmatpush2.msra.mxu0 %v299
    %370 = vmatprep.subr.mxu0 0.0
    %371 = vmatpush2.msra.mxu0 %v298
    %372 = vmatprep.subr.mxu0 0.0
    %373 = vmatpush2.msra.mxu0 %v297
    %374 = vmatprep.subr.mxu0 0.0
    %375 = vmatpush2.msra.mxu0 %v296
    %376 = vmatprep.mubr.f32.mxu0 %v308
    %377 = vmatmul.mubr.f32.gmra.mxu0 %v247
    %v378 = vpop.f32.mrf.mxu0
    %v379 = vadd.f32 %v306, %v378
    %v380 = vpop.f32.mrf.mxu0
    %381 = vmatprep.mubr.f32.mxu0 %v310
    %382 = vmatmul.mubr.f32.gmra.mxu0 %v278
    %v383 = vpop.f32.mrf.mxu0
    %v384 = vadd.f32 %v306, %v383
    %v385 = vpop.f32.mrf.mxu0
    %386 = vdwg.mxu0
    %v387 = vmax.f32 %v379, 0.0
    %v388 = vmax.f32 %v384, 0.0
    %v390 = vrot.slane %v387, 6
    %v392 = vsel %vm42, 0.0, %v390
    %v393 = vsel %vm42, %v390, 0.0
    %v396 = vrot.slane %v392, 1
    %v397 = vrot.slane %v393, 1
    %v398 = vsel %vm47, %v396, %v397
    %399 = vrot.lane.b32.xlu0 %v398, 32
    %v400 = vpop.permute.xlu0 %399
    %v402 = vrot.slane %v392, 2
    %v403 = vrot.slane %v393, 2
    %v404 = vsel %vm54, %v402, %v403
    %405 = vrot.lane.b32.xlu0 %v404, 64
    %v406 = vpop.permute.xlu0 %405
    %v408 = vrot.slane %v392, 3
    %v409 = vrot.slane %v393, 3
    %v410 = vsel %vm61, %v408, %v409
    %411 = vrot.lane.b32.xlu0 %v410, 96
    %v412 = vpop.permute.xlu0 %411
    %v414 = vrot.slane %v392, 4
    %v415 = vrot.slane %v393, 4
    %v416 = vsel %vm68, %v414, %v415
    %v417 = vsel %vm72, %v392, %v400
    %v418 = vsel %vm74, %v417, %v406
    %v419 = vsel %vm76, %v418, %v412
    %v421 = vrot.slane %v388, 6
    %v423 = vsel %vm42, 0.0, %v421
    %v424 = vsel %vm42, %v421, 0.0
    %v427 = vrot.slane %v423, 1
    %v428 = vrot.slane %v424, 1
    %v429 = vsel %vm47, %v427, %v428
    %430 = vrot.lane.b32.xlu0 %v429, 32
    %v431 = vpop.permute.xlu0 %430
    %v433 = vrot.slane %v423, 2
    %v434 = vrot.slane %v424, 2
    %v435 = vsel %vm54, %v433, %v434
    %436 = vrot.lane.b32.xlu0 %v435, 64
    %v437 = vpop.permute.xlu0 %436
    %v439 = vrot.slane %v423, 3
    %v440 = vrot.slane %v424, 3
    %v441 = vsel %vm61, %v439, %v440
    %442 = vrot.lane.b32.xlu0 %v441, 96
    %v443 = vpop.permute.xlu0 %442
    %v445 = vrot.slane %v423, 4
    %v446 = vrot.slane %v424, 4
    %v447 = vsel %vm68, %v445, %v446
    %v448 = vsel %vm72, %v423, %v431
    %v449 = vsel %vm74, %v448, %v437
    %v450 = vsel %vm76, %v449, %v443
    %s451 = scalar_lea.vmem %s2, 320
    %v452 = vld [vmem:[%s451] sm:$0xff]
    %v453 = vld [vmem:[%s451 + $0x8] sm:$0xff]
    %v454 = vld [vmem:[%s451 + $0x10] sm:$0xff]
    %v455 = vld [vmem:[%s451 + $0x18] sm:$0xff]
    %v456 = vld [vmem:[%s451 + $0x20] sm:$0xff]
    %v457 = vld [vmem:[%s451 + $0x28] sm:$0xff]
    %v458 = vld [vmem:[%s451 + $0x30] sm:$0xff]
    %v459 = vld [vmem:[%s451 + $0x38] sm:$0xff]
    %v460 = vld [vmem:[%s451 + $0x40] sm:$0xff]
    %v461 = vld [vmem:[%s451 + $0x48] sm:$0xff]
    %v462 = vld [vmem:[%s451 + $0x50] sm:$0xff]
    %v463 = vld [vmem:[%s451 + $0x58] sm:$0xff]
    %v464 = vld [vmem:[%s451 + $0x60] sm:$0xff]
    %v465 = vld [vmem:[%s451 + $0x68] sm:$0xff]
    %v466 = vld [vmem:[%s451 + $0x70] sm:$0xff]
    %v467 = vld [vmem:[%s451 + $0x78] sm:$0xff]
    %v468 = vld [vmem:[%s451 + $0x80] sm:$0xff]
    %v469 = vld [vmem:[%s451 + $0x88] sm:$0xff]
    %v470 = vld [vmem:[%s451 + $0x90] sm:$0xff]
    %v471 = vld [vmem:[%s451 + $0x98] sm:$0xff]
    %s472 = scalar_lea.vmem %s3, 2
    %v473 = vld [vmem:[%s472] sm:$0x1]
    %v475 = vlaneseq
    %v476 = vshrl.u32 %v475, 7
    %v477 = vsub.s32 0, %v476
    %v478 = vrot.slane %v473, %v477
    %v480 = vsel %vm72, %v416, 0
    %v482 = vsel %vm72, %v447, 0
    %484 = vmatprep.subr.mxu0 0.0
    %485 = vmatpush1.msra.mxu0 %v467
    %486 = vmatprep.subr.mxu0 0.0
    %487 = vmatpush1.msra.mxu0 %v466
    %488 = vmatprep.subr.mxu0 0.0
    %489 = vmatpush1.msra.mxu0 %v465
    %490 = vmatprep.subr.mxu0 0.0
    %491 = vmatpush1.msra.mxu0 %v464
    %492 = vmatprep.subr.mxu0 0.0
    %493 = vmatpush1.msra.mxu0 %v463
    %494 = vmatprep.subr.mxu0 0.0
    %495 = vmatpush1.msra.mxu0 %v462
    %496 = vmatprep.subr.mxu0 0.0
    %497 = vmatpush1.msra.mxu0 %v461
    %498 = vmatprep.subr.mxu0 0.0
    %499 = vmatpush1.msra.mxu0 %v460
    %500 = vmatprep.subr.mxu0 0.0
    %501 = vmatpush1.msra.mxu0 %v459
    %502 = vmatprep.subr.mxu0 0.0
    %503 = vmatpush1.msra.mxu0 %v458
    %504 = vmatprep.subr.mxu0 0.0
    %505 = vmatpush1.msra.mxu0 %v457
    %506 = vmatprep.subr.mxu0 0.0
    %507 = vmatpush1.msra.mxu0 %v456
    %508 = vmatprep.subr.mxu0 0.0
    %509 = vmatpush1.msra.mxu0 %v455
    %510 = vmatprep.subr.mxu0 0.0
    %511 = vmatpush1.msra.mxu0 %v454
    %512 = vmatprep.subr.mxu0 0.0
    %513 = vmatpush1.msra.mxu0 %v453
    %514 = vmatprep.subr.mxu0 0.0
    %515 = vmatpush1.msra.mxu0 %v452
    %516 = vmatprep.subr.mxu0 0.0
    %517 = vmatpush2.msra.mxu0 0.0
    %518 = vmatprep.subr.mxu0 0.0
    %519 = vmatpush2.msra.mxu0 0.0
    %520 = vmatprep.subr.mxu0 0.0
    %521 = vmatpush2.msra.mxu0 0.0
    %522 = vmatprep.subr.mxu0 0.0
    %523 = vmatpush2.msra.mxu0 0.0
    %524 = vmatprep.subr.mxu0 0.0
    %525 = vmatpush2.msra.mxu0 0.0
    %526 = vmatprep.subr.mxu0 0.0
    %527 = vmatpush2.msra.mxu0 0.0
    %528 = vmatprep.subr.mxu0 0.0
    %529 = vmatpush2.msra.mxu0 0.0
    %530 = vmatprep.subr.mxu0 0.0
    %531 = vmatpush2.msra.mxu0 0.0
    %532 = vmatprep.subr.mxu0 0.0
    %533 = vmatpush2.msra.mxu0 0.0
    %534 = vmatprep.subr.mxu0 0.0
    %535 = vmatpush2.msra.mxu0 0.0
    %536 = vmatprep.subr.mxu0 0.0
    %537 = vmatpush2.msra.mxu0 0.0
    %538 = vmatprep.subr.mxu0 0.0
    %539 = vmatpush2.msra.mxu0 0.0
    %540 = vmatprep.subr.mxu0 0.0
    %541 = vmatpush2.msra.mxu0 %v471
    %542 = vmatprep.subr.mxu0 0.0
    %543 = vmatpush2.msra.mxu0 %v470
    %544 = vmatprep.subr.mxu0 0.0
    %545 = vmatpush2.msra.mxu0 %v469
    %546 = vmatprep.subr.mxu0 0.0
    %547 = vmatpush2.msra.mxu0 %v468
    %548 = vmatprep.mubr.f32.mxu0 %v480
    %549 = vmatmul.mubr.f32.gmra.mxu0 %v419
    %v550 = vpop.f32.mrf.mxu0
    %v551 = vadd.f32 %v478, %v550
    %v552 = vpop.f32.mrf.mxu0
    %553 = vmatprep.mubr.f32.mxu0 %v482
    %554 = vmatmul.mubr.f32.gmra.mxu0 %v450
    %v555 = vpop.f32.mrf.mxu0
    %v556 = vadd.f32 %v478, %v555
    %v557 = vpop.f32.mrf.mxu0
    %558 = vdwg.mxu0
    %v559 = vmax.f32 %v551, 0.0
    %v560 = vmax.f32 %v556, 0.0
    %v561 = vld [vmem:[%s4] sm:$0xff]
    %v562 = vld [vmem:[%s4 + $0x8] sm:$0xff]
    %v563 = vld [vmem:[%s4 + $0x10] sm:$0xff]
    %v564 = vld [vmem:[%s4 + $0x18] sm:$0xff]
    %v565 = vld [vmem:[%s6] sm:$0x1]
    %v567 = vlaneseq
    %v568 = vshrl.u32 %v567, 7
    %v569 = vsub.s32 0, %v568
    %v570 = vrot.slane %v565, %v569
    %v573 = vsel %vm72, %v559, 0
    %v576 = vsel %vm72, %v560, 0
    %578 = vmatprep.subr.mxu0 0.0
    %579 = vmatpush1.msra.mxu0 0.0
    %580 = vmatprep.subr.mxu0 0.0
    %581 = vmatpush1.msra.mxu0 0.0
    %582 = vmatprep.subr.mxu0 0.0
    %583 = vmatpush1.msra.mxu0 0.0
    %584 = vmatprep.subr.mxu0 0.0
    %585 = vmatpush1.msra.mxu0 0.0
    %586 = vmatprep.subr.mxu0 0.0
    %587 = vmatpush1.msra.mxu0 0.0
    %588 = vmatprep.subr.mxu0 0.0
    %589 = vmatpush1.msra.mxu0 0.0
    %590 = vmatprep.subr.mxu0 0.0
    %591 = vmatpush1.msra.mxu0 0.0
    %592 = vmatprep.subr.mxu0 0.0
    %593 = vmatpush1.msra.mxu0 0.0
    %594 = vmatprep.subr.mxu0 0.0
    %595 = vmatpush1.msra.mxu0 0.0
    %596 = vmatprep.subr.mxu0 0.0
    %597 = vmatpush1.msra.mxu0 0.0
    %598 = vmatprep.subr.mxu0 0.0
    %599 = vmatpush1.msra.mxu0 0.0
    %600 = vmatprep.subr.mxu0 0.0
    %601 = vmatpush1.msra.mxu0 0.0
    %602 = vmatprep.subr.mxu0 0.0
    %603 = vmatpush1.msra.mxu0 %v564
    %604 = vmatprep.subr.mxu0 0.0
    %605 = vmatpush1.msra.mxu0 %v563
    %606 = vmatprep.subr.mxu0 0.0
    %607 = vmatpush1.msra.mxu0 %v562
    %608 = vmatprep.subr.mxu0 0.0
    %609 = vmatpush1.msra.mxu0 %v561
    %610 = vmatprep.subr.mxu0 0.0
    %611 = vmatpush2.msra.mxu0 0.0
    %612 = vmatprep.subr.mxu0 0.0
    %613 = vmatpush2.msra.mxu0 0.0
    %614 = vmatprep.subr.mxu0 0.0
    %615 = vmatpush2.msra.mxu0 0.0
    %616 = vmatprep.subr.mxu0 0.0
    %617 = vmatpush2.msra.mxu0 0.0
    %618 = vmatprep.subr.mxu0 0.0
    %619 = vmatpush2.msra.mxu0 0.0
    %620 = vmatprep.subr.mxu0 0.0
    %621 = vmatpush2.msra.mxu0 0.0
    %622 = vmatprep.subr.mxu0 0.0
    %623 = vmatpush2.msra.mxu0 0.0
    %624 = vmatprep.subr.mxu0 0.0
    %625 = vmatpush2.msra.mxu0 0.0
    %626 = vmatprep.subr.mxu0 0.0
    %627 = vmatpush2.msra.mxu0 0.0
    %628 = vmatprep.subr.mxu0 0.0
    %629 = vmatpush2.msra.mxu0 0.0
    %630 = vmatprep.subr.mxu0 0.0
    %631 = vmatpush2.msra.mxu0 0.0
    %632 = vmatprep.subr.mxu0 0.0
    %633 = vmatpush2.msra.mxu0 0.0
    %634 = vmatprep.subr.mxu0 0.0
    %635 = vmatpush2.msra.mxu0 0.0
    %636 = vmatprep.subr.mxu0 0.0
    %637 = vmatpush2.msra.mxu0 0.0
    %638 = vmatprep.subr.mxu0 0.0
    %639 = vmatpush2.msra.mxu0 0.0
    %640 = vmatprep.subr.mxu0 0.0
    %641 = vmatpush2.msra.mxu0 0.0
    %642 = vmatprep.mubr.f32.mxu0 0.0
    %643 = vmatmul.mubr.f32.gmra.mxu0 %v573
    %v644 = vpop.f32.mrf.mxu0
    %v645 = vadd.f32 %v570, %v644
    %v646 = vpop.f32.mrf.mxu0
    %647 = vmatprep.mubr.f32.mxu0 0.0
    %648 = vmatmul.mubr.f32.gmra.mxu0 %v576
    %v649 = vpop.f32.mrf.mxu0
    %v650 = vadd.f32 %v570, %v649
    %v651 = vpop.f32.mrf.mxu0
    %652 = vdwg.mxu0
    %v653 = vld [vmem:[%s5] sm:$0xff]
    %v654 = vld [vmem:[%s5 + $0x8] sm:$0xff]
    %s655 = sld [smem:[#allocation3]]
    %v656 = vstv %s655
    %s657 = sld [smem:[#allocation3 + $0x1]]
    %v658 = vstv %s657
    %vm659 = vcmask 1040384
    %v660 = vsel %vm659, %v656, %v658
    %v661 = vsel %vm42, %v660, %v656
    %vm662 = vcmask 1042432
    %v663 = vsel %vm662, %v661, %v658
    %v665 = vrot.slane %v650, 7
    %v668 = vrot.slane %v645, 5
    %v670 = vrot.slane %v650, 4
    %v672 = vsel %vm659, %v645, %v665
    %v673 = vsel %vm42, %v672, %v668
    %v674 = vsel %vm662, %v673, %v670
    %vm675 = vcmask 130048
    %v677 = vsel %vm675, 0.0, 0
    %679 = vmatprep.subr.mxu0 0.0
    %680 = vmatpush1.msra.mxu0 0.0
    %681 = vmatprep.subr.mxu0 0.0
    %682 = vmatpush1.msra.mxu0 0.0
    %683 = vmatprep.subr.mxu0 0.0
    %684 = vmatpush1.msra.mxu0 0.0
    %685 = vmatprep.subr.mxu0 0.0
    %686 = vmatpush1.msra.mxu0 0.0
    %687 = vmatprep.subr.mxu0 0.0
    %688 = vmatpush1.msra.mxu0 0.0
    %689 = vmatprep.subr.mxu0 0.0
    %690 = vmatpush1.msra.mxu0 0.0
    %691 = vmatprep.subr.mxu0 0.0
    %692 = vmatpush1.msra.mxu0 0.0
    %693 = vmatprep.subr.mxu0 0.0
    %694 = vmatpush1.msra.mxu0 0.0
    %695 = vmatprep.subr.mxu0 0.0
    %696 = vmatpush1.msra.mxu0 0.0
    %697 = vmatprep.subr.mxu0 0.0
    %698 = vmatpush1.msra.mxu0 0.0
    %699 = vmatprep.subr.mxu0 0.0
    %700 = vmatpush1.msra.mxu0 0.0
    %701 = vmatprep.subr.mxu0 0.0
    %702 = vmatpush1.msra.mxu0 0.0
    %703 = vmatprep.subr.mxu0 0.0
    %704 = vmatpush1.msra.mxu0 0.0
    %705 = vmatprep.subr.mxu0 0.0
    %706 = vmatpush1.msra.mxu0 0.0
    %707 = vmatprep.subr.mxu0 0.0
    %708 = vmatpush1.msra.mxu0 %v654
    %709 = vmatprep.subr.mxu0 0.0
    %710 = vmatpush1.msra.mxu0 %v653
    %711 = vmatprep.subr.mxu0 0.0
    %712 = vmatpush2.msra.mxu0 0.0
    %713 = vmatprep.subr.mxu0 0.0
    %714 = vmatpush2.msra.mxu0 0.0
    %715 = vmatprep.subr.mxu0 0.0
    %716 = vmatpush2.msra.mxu0 0.0
    %717 = vmatprep.subr.mxu0 0.0
    %718 = vmatpush2.msra.mxu0 0.0
    %719 = vmatprep.subr.mxu0 0.0
    %720 = vmatpush2.msra.mxu0 0.0
    %721 = vmatprep.subr.mxu0 0.0
    %722 = vmatpush2.msra.mxu0 0.0
    %723 = vmatprep.subr.mxu0 0.0
    %724 = vmatpush2.msra.mxu0 0.0
    %725 = vmatprep.subr.mxu0 0.0
    %726 = vmatpush2.msra.mxu0 0.0
    %727 = vmatprep.subr.mxu0 0.0
    %728 = vmatpush2.msra.mxu0 0.0
    %729 = vmatprep.subr.mxu0 0.0
    %730 = vmatpush2.msra.mxu0 0.0
    %731 = vmatprep.subr.mxu0 0.0
    %732 = vmatpush2.msra.mxu0 0.0
    %733 = vmatprep.subr.mxu0 0.0
    %734 = vmatpush2.msra.mxu0 0.0
    %735 = vmatprep.subr.mxu0 0.0
    %736 = vmatpush2.msra.mxu0 0.0
    %737 = vmatprep.subr.mxu0 0.0
    %738 = vmatpush2.msra.mxu0 0.0
    %739 = vmatprep.subr.mxu0 0.0
    %740 = vmatpush2.msra.mxu0 0.0
    %741 = vmatprep.subr.mxu0 0.0
    %742 = vmatpush2.msra.mxu0 0.0
    %743 = vmatprep.mubr.f32.mxu0 0.0
    %744 = vmatmul.mubr.f32.gmra.mxu0 %v677
    %v745 = vpop.f32.mrf.mxu0
    %v746 = vadd.f32 0.0, %v745
    %v747 = vpop.f32.mrf.mxu0
    %748 = vdwg.mxu0
    %v749 = vadd.f32 %v674, %v746
    %751 = vrot.lane.b32.xlu0 %v749, 64
    %v752 = vpop.permute.xlu0 %751
    %v754 = vsel %vm42, %v749, %v752
    %v755 = vxor.u32 %v754, 2147483648
    %v756 = vmul.f32 %v755, 1.442695
    %v757 = vpow.pop %v756
    %v758 = vadd.f32 %v757, 1.0
    %v759 = vrcp.pop %v758
    %v760 = vmul.f32 1.0, %v759
    %v761 = vtanh.pop %v754
    %v762 = vmul.f32 %v760, 0.0
    %764 = vrot.lane.b32.xlu0 %v761, 80
    %v765 = vpop.permute.xlu0 %764
    %v767 = vmul.f32 %v760, %v765
    %769 = vrot.lane.b32.xlu0 %v767, 16
    %v770 = vpop.permute.xlu0 %769
    %v772 = vadd.f32 %v762, %v770
    %v773 = vtanh.pop %v772
    %775 = vrot.lane.b32.xlu0 %v773, 16
    %v776 = vpop.permute.xlu0 %775
    %v778 = vmul.f32 %v760, %v776
    %v779 = vsel %vm42, 0, 7
    %vm780 = vcmp.gt.s32.totalorder %v663, %v779
    %v781 = vsel %vm780, 1, 0
    %782 = vset.pattern.permute.xlu0 0
    %783 = vperm.xlu0 %782, %v781
    %v784 = vpop.permute.xlu0 %783
    %vm785 = vcmp.eq.s32.totalorder %v784, 1
    %v786 = vsel %vm785, %v778, 0.0
    %v787 = vsel %vm785, %v772, 0.0
    %v788 = vrot.slane %v645, 1
    %v790 = vrot.slane %v645, 4
    %v792 = vrot.slane %v650, 3
    %v794 = vsel %vm659, %v788, %v650
    %v795 = vsel %vm42, %v794, %v790
    %v796 = vsel %vm662, %v795, %v792
    %798 = vrot.lane.b32.xlu0 %v786, 96
    %v799 = vpop.permute.xlu0 %798
    %v800 = vsel %vm675, %v799, 0
    %802 = vmatprep.subr.mxu0 0.0
    %803 = vmatpush1.msra.mxu0 0.0
    %804 = vmatprep.subr.mxu0 0.0
    %805 = vmatpush1.msra.mxu0 0.0
    %806 = vmatprep.subr.mxu0 0.0
    %807 = vmatpush1.msra.mxu0 0.0
    %808 = vmatprep.subr.mxu0 0.0
    %809 = vmatpush1.msra.mxu0 0.0
    %810 = vmatprep.subr.mxu0 0.0
    %811 = vmatpush1.msra.mxu0 0.0
    %812 = vmatprep.subr.mxu0 0.0
    %813 = vmatpush1.msra.mxu0 0.0
    %814 = vmatprep.subr.mxu0 0.0
    %815 = vmatpush1.msra.mxu0 0.0
    %816 = vmatprep.subr.mxu0 0.0
    %817 = vmatpush1.msra.mxu0 0.0
    %818 = vmatprep.subr.mxu0 0.0
    %819 = vmatpush1.msra.mxu0 0.0
    %820 = vmatprep.subr.mxu0 0.0
    %821 = vmatpush1.msra.mxu0 0.0
    %822 = vmatprep.subr.mxu0 0.0
    %823 = vmatpush1.msra.mxu0 0.0
    %824 = vmatprep.subr.mxu0 0.0
    %825 = vmatpush1.msra.mxu0 0.0
    %826 = vmatprep.subr.mxu0 0.0
    %827 = vmatpush1.msra.mxu0 0.0
    %828 = vmatprep.subr.mxu0 0.0
    %829 = vmatpush1.msra.mxu0 0.0
    %830 = vmatprep.subr.mxu0 0.0
    %831 = vmatpush1.msra.mxu0 %v654
    %832 = vmatprep.subr.mxu0 0.0
    %833 = vmatpush1.msra.mxu0 %v653
    %834 = vmatprep.subr.mxu0 0.0
    %835 = vmatpush2.msra.mxu0 0.0
    %836 = vmatprep.subr.mxu0 0.0
    %837 = vmatpush2.msra.mxu0 0.0
    %838 = vmatprep.subr.mxu0 0.0
    %839 = vmatpush2.msra.mxu0 0.0
    %840 = vmatprep.subr.mxu0 0.0
    %841 = vmatpush2.msra.mxu0 0.0
    %842 = vmatprep.subr.mxu0 0.0
    %843 = vmatpush2.msra.mxu0 0.0
    %844 = vmatprep.subr.mxu0 0.0
    %845 = vmatpush2.msra.mxu0 0.0
    %846 = vmatprep.subr.mxu0 0.0
    %847 = vmatpush2.msra.mxu0 0.0
    %848 = vmatprep.subr.mxu0 0.0
    %849 = vmatpush2.msra.mxu0 0.0
    %850 = vmatprep.subr.mxu0 0.0
    %851 = vmatpush2.msra.mxu0 0.0
    %852 = vmatprep.subr.mxu0 0.0
    %853 = vmatpush2.msra.mxu0 0.0
    %854 = vmatprep.subr.mxu0 0.0
    %855 = vmatpush2.msra.mxu0 0.0
    %856 = vmatprep.subr.mxu0 0.0
    %857 = vmatpush2.msra.mxu0 0.0
    %858 = vmatprep.subr.mxu0 0.0
    %859 = vmatpush2.msra.mxu0 0.0
    %860 = vmatprep.subr.mxu0 0.0
    %861 = vmatpush2.msra.mxu0 0.0
    %862 = vmatprep.subr.mxu0 0.0
    %863 = vmatpush2.msra.mxu0 0.0
    %864 = vmatprep.subr.mxu0 0.0
    %865 = vmatpush2.msra.mxu0 0.0
    %866 = vmatprep.mubr.f32.mxu0 0.0
    %867 = vmatmul.mubr.f32.gmra.mxu0 %v800
    %v868 = vpop.f32.mrf.mxu0
    %v869 = vadd.f32 0.0, %v868
    %v870 = vpop.f32.mrf.mxu0
    %871 = vdwg.mxu0
    %v872 = vadd.f32 %v796, %v869
    %874 = vrot.lane.b32.xlu0 %v872, 64
    %v875 = vpop.permute.xlu0 %874
    %v877 = vsel %vm42, %v872, %v875
    %v878 = vxor.u32 %v877, 2147483648
    %v879 = vmul.f32 %v878, 1.442695
    %v880 = vpow.pop %v879
    %v881 = vadd.f32 %v880, 1.0
    %v882 = vrcp.pop %v881
    %v883 = vmul.f32 1.0, %v882
    %v884 = vtanh.pop %v877
    %v885 = vmul.f32 %v883, %v787
    %887 = vrot.lane.b32.xlu0 %v884, 80
    %v888 = vpop.permute.xlu0 %887
    %v890 = vmul.f32 %v883, %v888
    %892 = vrot.lane.b32.xlu0 %v890, 16
    %v893 = vpop.permute.xlu0 %892
    %v895 = vadd.f32 %v885, %v893
    %v896 = vtanh.pop %v895
    %898 = vrot.lane.b32.xlu0 %v896, 16
    %v899 = vpop.permute.xlu0 %898
    %v901 = vmul.f32 %v883, %v899
    %v902 = vsel %vm42, 1, 6
    %vm903 = vcmp.gt.s32.totalorder %v663, %v902
    %v904 = vsel %vm903, 1, 0
    %905 = vset.pattern.permute.xlu0 0
    %906 = vperm.xlu0 %905, %v904
    %v907 = vpop.permute.xlu0 %906
    %vm908 = vcmp.eq.s32.totalorder %v907, 1
    %v909 = vsel %vm908, %v901, %v786
    %v910 = vsel %vm908, %v895, %v787
    %v911 = vsel %vm908, %v901, 0.0
    %v912 = vrot.slane %v645, 2
    %v914 = vrot.slane %v650, 1
    %v916 = vrot.slane %v645, 3
    %v918 = vrot.slane %v650, 2
    %v920 = vsel %vm659, %v912, %v914
    %v921 = vsel %vm42, %v920, %v916
    %v922 = vsel %vm662, %v921, %v918
    %924 = vrot.lane.b32.xlu0 %v909, 96
    %v925 = vpop.permute.xlu0 %924
    %v926 = vsel %vm675, %v925, 0
    %928 = vmatprep.subr.mxu0 0.0
    %929 = vmatpush1.msra.mxu0 0.0
    %930 = vmatprep.subr.mxu0 0.0
    %931 = vmatpush1.msra.mxu0 0.0
    %932 = vmatprep.subr.mxu0 0.0
    %933 = vmatpush1.msra.mxu0 0.0
    %934 = vmatprep.subr.mxu0 0.0
    %935 = vmatpush1.msra.mxu0 0.0
    %936 = vmatprep.subr.mxu0 0.0
    %937 = vmatpush1.msra.mxu0 0.0
    %938 = vmatprep.subr.mxu0 0.0
    %939 = vmatpush1.msra.mxu0 0.0
    %940 = vmatprep.subr.mxu0 0.0
    %941 = vmatpush1.msra.mxu0 0.0
    %942 = vmatprep.subr.mxu0 0.0
    %943 = vmatpush1.msra.mxu0 0.0
    %944 = vmatprep.subr.mxu0 0.0
    %945 = vmatpush1.msra.mxu0 0.0
    %946 = vmatprep.subr.mxu0 0.0
    %947 = vmatpush1.msra.mxu0 0.0
    %948 = vmatprep.subr.mxu0 0.0
    %949 = vmatpush1.msra.mxu0 0.0
    %950 = vmatprep.subr.mxu0 0.0
    %951 = vmatpush1.msra.mxu0 0.0
    %952 = vmatprep.subr.mxu0 0.0
    %953 = vmatpush1.msra.mxu0 0.0
    %954 = vmatprep.subr.mxu0 0.0
    %955 = vmatpush1.msra.mxu0 0.0
    %956 = vmatprep.subr.mxu0 0.0
    %957 = vmatpush1.msra.mxu0 %v654
    %958 = vmatprep.subr.mxu0 0.0
    %959 = vmatpush1.msra.mxu0 %v653
    %960 = vmatprep.subr.mxu0 0.0
    %961 = vmatpush2.msra.mxu0 0.0
    %962 = vmatprep.subr.mxu0 0.0
    %963 = vmatpush2.msra.mxu0 0.0
    %964 = vmatprep.subr.mxu0 0.0
    %965 = vmatpush2.msra.mxu0 0.0
    %966 = vmatprep.subr.mxu0 0.0
    %967 = vmatpush2.msra.mxu0 0.0
    %968 = vmatprep.subr.mxu0 0.0
    %969 = vmatpush2.msra.mxu0 0.0
    %970 = vmatprep.subr.mxu0 0.0
    %971 = vmatpush2.msra.mxu0 0.0
    %972 = vmatprep.subr.mxu0 0.0
    %973 = vmatpush2.msra.mxu0 0.0
    %974 = vmatprep.subr.mxu0 0.0
    %975 = vmatpush2.msra.mxu0 0.0
    %976 = vmatprep.subr.mxu0 0.0
    %977 = vmatpush2.msra.mxu0 0.0
    %978 = vmatprep.subr.mxu0 0.0
    %979 = vmatpush2.msra.mxu0 0.0
    %980 = vmatprep.subr.mxu0 0.0
    %981 = vmatpush2.msra.mxu0 0.0
    %982 = vmatprep.subr.mxu0 0.0
    %983 = vmatpush2.msra.mxu0 0.0
    %984 = vmatprep.subr.mxu0 0.0
    %985 = vmatpush2.msra.mxu0 0.0
    %986 = vmatprep.subr.mxu0 0.0
    %987 = vmatpush2.msra.mxu0 0.0
    %988 = vmatprep.subr.mxu0 0.0
    %989 = vmatpush2.msra.mxu0 0.0
    %990 = vmatprep.subr.mxu0 0.0
    %991 = vmatpush2.msra.mxu0 0.0
    %992 = vmatprep.mubr.f32.mxu0 0.0
    %993 = vmatmul.mubr.f32.gmra.mxu0 %v926
    %v994 = vpop.f32.mrf.mxu0
    %v995 = vadd.f32 0.0, %v994
    %v996 = vpop.f32.mrf.mxu0
    %997 = vdwg.mxu0
    %v998 = vadd.f32 %v922, %v995
    %1000 = vrot.lane.b32.xlu0 %v998, 64
    %v1001 = vpop.permute.xlu0 %1000
    %v1003 = vsel %vm42, %v998, %v1001
    %v1004 = vxor.u32 %v1003, 2147483648
    %v1005 = vmul.f32 %v1004, 1.442695
    %v1006 = vpow.pop %v1005
    %v1007 = vadd.f32 %v1006, 1.0
    %v1008 = vrcp.pop %v1007
    %v1009 = vmul.f32 1.0, %v1008
    %v1010 = vtanh.pop %v1003
    %v1011 = vmul.f32 %v1009, %v910
    %1013 = vrot.lane.b32.xlu0 %v1010, 80
    %v1014 = vpop.permute.xlu0 %1013
    %v1016 = vmul.f32 %v1009, %v1014
    %1018 = vrot.lane.b32.xlu0 %v1016, 16
    %v1019 = vpop.permute.xlu0 %1018
    %v1021 = vadd.f32 %v1011, %v1019
    %v1022 = vtanh.pop %v1021
    %1024 = vrot.lane.b32.xlu0 %v1022, 16
    %v1025 = vpop.permute.xlu0 %1024
    %v1027 = vmul.f32 %v1009, %v1025
    %v1028 = vsel %vm42, 2, 5
    %vm1029 = vcmp.gt.s32.totalorder %v663, %v1028
    %v1030 = vsel %vm1029, 1, 0
    %1031 = vset.pattern.permute.xlu0 0
    %1032 = vperm.xlu0 %1031, %v1030
    %v1033 = vpop.permute.xlu0 %1032
    %vm1034 = vcmp.eq.s32.totalorder %v1033, 1
    %v1035 = vsel %vm1034, %v1027, %v909
    %v1036 = vsel %vm1034, %v1021, %v910
    %v1037 = vsel %vm1034, %v1027, 0.0
    %v1038 = vsel %vm659, %v916, %v918
    %v1039 = vsel %vm42, %v1038, %v912
    %v1040 = vsel %vm662, %v1039, %v914
    %1042 = vrot.lane.b32.xlu0 %v1035, 96
    %v1043 = vpop.permute.xlu0 %1042
    %v1044 = vsel %vm675, %v1043, 0
    %1046 = vmatprep.subr.mxu0 0.0
    %1047 = vmatpush1.msra.mxu0 0.0
    %1048 = vmatprep.subr.mxu0 0.0
    %1049 = vmatpush1.msra.mxu0 0.0
    %1050 = vmatprep.subr.mxu0 0.0
    %1051 = vmatpush1.msra.mxu0 0.0
    %1052 = vmatprep.subr.mxu0 0.0
    %1053 = vmatpush1.msra.mxu0 0.0
    %1054 = vmatprep.subr.mxu0 0.0
    %1055 = vmatpush1.msra.mxu0 0.0
    %1056 = vmatprep.subr.mxu0 0.0
    %1057 = vmatpush1.msra.mxu0 0.0
    %1058 = vmatprep.subr.mxu0 0.0
    %1059 = vmatpush1.msra.mxu0 0.0
    %1060 = vmatprep.subr.mxu0 0.0
    %1061 = vmatpush1.msra.mxu0 0.0
    %1062 = vmatprep.subr.mxu0 0.0
    %1063 = vmatpush1.msra.mxu0 0.0
    %1064 = vmatprep.subr.mxu0 0.0
    %1065 = vmatpush1.msra.mxu0 0.0
    %1066 = vmatprep.subr.mxu0 0.0
    %1067 = vmatpush1.msra.mxu0 0.0
    %1068 = vmatprep.subr.mxu0 0.0
    %1069 = vmatpush1.msra.mxu0 0.0
    %1070 = vmatprep.subr.mxu0 0.0
    %1071 = vmatpush1.msra.mxu0 0.0
    %1072 = vmatprep.subr.mxu0 0.0
    %1073 = vmatpush1.msra.mxu0 0.0
    %1074 = vmatprep.subr.mxu0 0.0
    %1075 = vmatpush1.msra.mxu0 %v654
    %1076 = vmatprep.subr.mxu0 0.0
    %1077 = vmatpush1.msra.mxu0 %v653
    %1078 = vmatprep.subr.mxu0 0.0
    %1079 = vmatpush2.msra.mxu0 0.0
    %1080 = vmatprep.subr.mxu0 0.0
    %1081 = vmatpush2.msra.mxu0 0.0
    %1082 = vmatprep.subr.mxu0 0.0
    %1083 = vmatpush2.msra.mxu0 0.0
    %1084 = vmatprep.subr.mxu0 0.0
    %1085 = vmatpush2.msra.mxu0 0.0
    %1086 = vmatprep.subr.mxu0 0.0
    %1087 = vmatpush2.msra.mxu0 0.0
    %1088 = vmatprep.subr.mxu0 0.0
    %1089 = vmatpush2.msra.mxu0 0.0
    %1090 = vmatprep.subr.mxu0 0.0
    %1091 = vmatpush2.msra.mxu0 0.0
    %1092 = vmatprep.subr.mxu0 0.0
    %1093 = vmatpush2.msra.mxu0 0.0
    %1094 = vmatprep.subr.mxu0 0.0
    %1095 = vmatpush2.msra.mxu0 0.0
    %1096 = vmatprep.subr.mxu0 0.0
    %1097 = vmatpush2.msra.mxu0 0.0
    %1098 = vmatprep.subr.mxu0 0.0
    %1099 = vmatpush2.msra.mxu0 0.0
    %1100 = vmatprep.subr.mxu0 0.0
    %1101 = vmatpush2.msra.mxu0 0.0
    %1102 = vmatprep.subr.mxu0 0.0
    %1103 = vmatpush2.msra.mxu0 0.0
    %1104 = vmatprep.subr.mxu0 0.0
    %1105 = vmatpush2.msra.mxu0 0.0
    %1106 = vmatprep.subr.mxu0 0.0
    %1107 = vmatpush2.msra.mxu0 0.0
    %1108 = vmatprep.subr.mxu0 0.0
    %1109 = vmatpush2.msra.mxu0 0.0
    %1110 = vmatprep.mubr.f32.mxu0 0.0
    %1111 = vmatmul.mubr.f32.gmra.mxu0 %v1044
    %v1112 = vpop.f32.mrf.mxu0
    %v1113 = vadd.f32 0.0, %v1112
    %v1114 = vpop.f32.mrf.mxu0
    %1115 = vdwg.mxu0
    %v1116 = vadd.f32 %v1040, %v1113
    %1118 = vrot.lane.b32.xlu0 %v1116, 64
    %v1119 = vpop.permute.xlu0 %1118
    %v1121 = vsel %vm42, %v1116, %v1119
    %v1122 = vxor.u32 %v1121, 2147483648
    %v1123 = vmul.f32 %v1122, 1.442695
    %v1124 = vpow.pop %v1123
    %v1125 = vadd.f32 %v1124, 1.0
    %v1126 = vrcp.pop %v1125
    %v1127 = vmul.f32 1.0, %v1126
    %v1128 = vtanh.pop %v1121
    %v1129 = vmul.f32 %v1127, %v1036
    %1131 = vrot.lane.b32.xlu0 %v1128, 80
    %v1132 = vpop.permute.xlu0 %1131
    %v1134 = vmul.f32 %v1127, %v1132
    %1136 = vrot.lane.b32.xlu0 %v1134, 16
    %v1137 = vpop.permute.xlu0 %1136
    %v1139 = vadd.f32 %v1129, %v1137
    %v1140 = vtanh.pop %v1139
    %1142 = vrot.lane.b32.xlu0 %v1140, 16
    %v1143 = vpop.permute.xlu0 %1142
    %v1145 = vmul.f32 %v1127, %v1143
    %v1146 = vsel %vm42, 3, 4
    %vm1147 = vcmp.gt.s32.totalorder %v663, %v1146
    %v1148 = vsel %vm1147, 1, 0
    %1149 = vset.pattern.permute.xlu0 0
    %1150 = vperm.xlu0 %1149, %v1148
    %v1151 = vpop.permute.xlu0 %1150
    %vm1152 = vcmp.eq.s32.totalorder %v1151, 1
    %v1153 = vsel %vm1152, %v1145, %v1035
    %v1154 = vsel %vm1152, %v1139, %v1036
    %v1155 = vsel %vm1152, %v1145, 0.0
    %v1156 = vsel %vm659, %v790, %v792
    %v1157 = vsel %vm42, %v1156, %v788
    %v1158 = vsel %vm662, %v1157, %v650
    %1160 = vrot.lane.b32.xlu0 %v1153, 96
    %v1161 = vpop.permute.xlu0 %1160
    %v1162 = vsel %vm675, %v1161, 0
    %1164 = vmatprep.subr.mxu0 0.0
    %1165 = vmatpush1.msra.mxu0 0.0
    %1166 = vmatprep.subr.mxu0 0.0
    %1167 = vmatpush1.msra.mxu0 0.0
    %1168 = vmatprep.subr.mxu0 0.0
    %1169 = vmatpush1.msra.mxu0 0.0
    %1170 = vmatprep.subr.mxu0 0.0
    %1171 = vmatpush1.msra.mxu0 0.0
    %1172 = vmatprep.subr.mxu0 0.0
    %1173 = vmatpush1.msra.mxu0 0.0
    %1174 = vmatprep.subr.mxu0 0.0
    %1175 = vmatpush1.msra.mxu0 0.0
    %1176 = vmatprep.subr.mxu0 0.0
    %1177 = vmatpush1.msra.mxu0 0.0
    %1178 = vmatprep.subr.mxu0 0.0
    %1179 = vmatpush1.msra.mxu0 0.0
    %1180 = vmatprep.subr.mxu0 0.0
    %1181 = vmatpush1.msra.mxu0 0.0
    %1182 = vmatprep.subr.mxu0 0.0
    %1183 = vmatpush1.msra.mxu0 0.0
    %1184 = vmatprep.subr.mxu0 0.0
    %1185 = vmatpush1.msra.mxu0 0.0
    %1186 = vmatprep.subr.mxu0 0.0
    %1187 = vmatpush1.msra.mxu0 0.0
    %1188 = vmatprep.subr.mxu0 0.0
    %1189 = vmatpush1.msra.mxu0 0.0
    %1190 = vmatprep.subr.mxu0 0.0
    %1191 = vmatpush1.msra.mxu0 0.0
    %1192 = vmatprep.subr.mxu0 0.0
    %1193 = vmatpush1.msra.mxu0 %v654
    %1194 = vmatprep.subr.mxu0 0.0
    %1195 = vmatpush1.msra.mxu0 %v653
    %1196 = vmatprep.subr.mxu0 0.0
    %1197 = vmatpush2.msra.mxu0 0.0
    %1198 = vmatprep.subr.mxu0 0.0
    %1199 = vmatpush2.msra.mxu0 0.0
    %1200 = vmatprep.subr.mxu0 0.0
    %1201 = vmatpush2.msra.mxu0 0.0
    %1202 = vmatprep.subr.mxu0 0.0
    %1203 = vmatpush2.msra.mxu0 0.0
    %1204 = vmatprep.subr.mxu0 0.0
    %1205 = vmatpush2.msra.mxu0 0.0
    %1206 = vmatprep.subr.mxu0 0.0
    %1207 = vmatpush2.msra.mxu0 0.0
    %1208 = vmatprep.subr.mxu0 0.0
    %1209 = vmatpush2.msra.mxu0 0.0
    %1210 = vmatprep.subr.mxu0 0.0
    %1211 = vmatpush2.msra.mxu0 0.0
    %1212 = vmatprep.subr.mxu0 0.0
    %1213 = vmatpush2.msra.mxu0 0.0
    %1214 = vmatprep.subr.mxu0 0.0
    %1215 = vmatpush2.msra.mxu0 0.0
    %1216 = vmatprep.subr.mxu0 0.0
    %1217 = vmatpush2.msra.mxu0 0.0
    %1218 = vmatprep.subr.mxu0 0.0
    %1219 = vmatpush2.msra.mxu0 0.0
    %1220 = vmatprep.subr.mxu0 0.0
    %1221 = vmatpush2.msra.mxu0 0.0
    %1222 = vmatprep.subr.mxu0 0.0
    %1223 = vmatpush2.msra.mxu0 0.0
    %1224 = vmatprep.subr.mxu0 0.0
    %1225 = vmatpush2.msra.mxu0 0.0
    %1226 = vmatprep.subr.mxu0 0.0
    %1227 = vmatpush2.msra.mxu0 0.0
    %1228 = vmatprep.mubr.f32.mxu0 0.0
    %1229 = vmatmul.mubr.f32.gmra.mxu0 %v1162
    %v1230 = vpop.f32.mrf.mxu0
    %v1231 = vadd.f32 0.0, %v1230
    %v1232 = vpop.f32.mrf.mxu0
    %1233 = vdwg.mxu0
    %v1234 = vadd.f32 %v1158, %v1231
    %1236 = vrot.lane.b32.xlu0 %v1234, 64
    %v1237 = vpop.permute.xlu0 %1236
    %v1239 = vsel %vm42, %v1234, %v1237
    %v1240 = vxor.u32 %v1239, 2147483648
    %v1241 = vmul.f32 %v1240, 1.442695
    %v1242 = vpow.pop %v1241
    %v1243 = vadd.f32 %v1242, 1.0
    %v1244 = vrcp.pop %v1243
    %v1245 = vmul.f32 1.0, %v1244
    %v1246 = vtanh.pop %v1239
    %v1247 = vmul.f32 %v1245, %v1154
    %1249 = vrot.lane.b32.xlu0 %v1246, 80
    %v1250 = vpop.permute.xlu0 %1249
    %v1252 = vmul.f32 %v1245, %v1250
    %1254 = vrot.lane.b32.xlu0 %v1252, 16
    %v1255 = vpop.permute.xlu0 %1254
    %v1257 = vadd.f32 %v1247, %v1255
    %v1258 = vtanh.pop %v1257
    %1260 = vrot.lane.b32.xlu0 %v1258, 16
    %v1261 = vpop.permute.xlu0 %1260
    %v1263 = vmul.f32 %v1245, %v1261
    %v1264 = vsel %vm42, 4, 3
    %vm1265 = vcmp.gt.s32.totalorder %v663, %v1264
    %v1266 = vsel %vm1265, 1, 0
    %1267 = vset.pattern.permute.xlu0 0
    %1268 = vperm.xlu0 %1267, %v1266
    %v1269 = vpop.permute.xlu0 %1268
    %vm1270 = vcmp.eq.s32.totalorder %v1269, 1
    %v1271 = vsel %vm1270, %v1263, %v1153
    %v1272 = vsel %vm1270, %v1257, %v1154
    %v1273 = vsel %vm1270, %v1263, 0.0
    %v1274 = vsel %vm659, %v668, %v670
    %v1275 = vsel %vm42, %v1274, %v645
    %v1276 = vsel %vm662, %v1275, %v665
    %1278 = vrot.lane.b32.xlu0 %v1271, 96
    %v1279 = vpop.permute.xlu0 %1278
    %v1280 = vsel %vm675, %v1279, 0
    %1282 = vmatprep.subr.mxu0 0.0
    %1283 = vmatpush1.msra.mxu0 0.0
    %1284 = vmatprep.subr.mxu0 0.0
    %1285 = vmatpush1.msra.mxu0 0.0
    %1286 = vmatprep.subr.mxu0 0.0
    %1287 = vmatpush1.msra.mxu0 0.0
    %1288 = vmatprep.subr.mxu0 0.0
    %1289 = vmatpush1.msra.mxu0 0.0
    %1290 = vmatprep.subr.mxu0 0.0
    %1291 = vmatpush1.msra.mxu0 0.0
    %1292 = vmatprep.subr.mxu0 0.0
    %1293 = vmatpush1.msra.mxu0 0.0
    %1294 = vmatprep.subr.mxu0 0.0
    %1295 = vmatpush1.msra.mxu0 0.0
    %1296 = vmatprep.subr.mxu0 0.0
    %1297 = vmatpush1.msra.mxu0 0.0
    %1298 = vmatprep.subr.mxu0 0.0
    %1299 = vmatpush1.msra.mxu0 0.0
    %1300 = vmatprep.subr.mxu0 0.0
    %1301 = vmatpush1.msra.mxu0 0.0
    %1302 = vmatprep.subr.mxu0 0.0
    %1303 = vmatpush1.msra.mxu0 0.0
    %1304 = vmatprep.subr.mxu0 0.0
    %1305 = vmatpush1.msra.mxu0 0.0
    %1306 = vmatprep.subr.mxu0 0.0
    %1307 = vmatpush1.msra.mxu0 0.0
    %1308 = vmatprep.subr.mxu0 0.0
    %1309 = vmatpush1.msra.mxu0 0.0
    %1310 = vmatprep.subr.mxu0 0.0
    %1311 = vmatpush1.msra.mxu0 %v654
    %1312 = vmatprep.subr.mxu0 0.0
    %1313 = vmatpush1.msra.mxu0 %v653
    %1314 = vmatprep.subr.mxu0 0.0
    %1315 = vmatpush2.msra.mxu0 0.0
    %1316 = vmatprep.subr.mxu0 0.0
    %1317 = vmatpush2.msra.mxu0 0.0
    %1318 = vmatprep.subr.mxu0 0.0
    %1319 = vmatpush2.msra.mxu0 0.0
    %1320 = vmatprep.subr.mxu0 0.0
    %1321 = vmatpush2.msra.mxu0 0.0
    %1322 = vmatprep.subr.mxu0 0.0
    %1323 = vmatpush2.msra.mxu0 0.0
    %1324 = vmatprep.subr.mxu0 0.0
    %1325 = vmatpush2.msra.mxu0 0.0
    %1326 = vmatprep.subr.mxu0 0.0
    %1327 = vmatpush2.msra.mxu0 0.0
    %1328 = vmatprep.subr.mxu0 0.0
    %1329 = vmatpush2.msra.mxu0 0.0
    %1330 = vmatprep.subr.mxu0 0.0
    %1331 = vmatpush2.msra.mxu0 0.0
    %1332 = vmatprep.subr.mxu0 0.0
    %1333 = vmatpush2.msra.mxu0 0.0
    %1334 = vmatprep.subr.mxu0 0.0
    %1335 = vmatpush2.msra.mxu0 0.0
    %1336 = vmatprep.subr.mxu0 0.0
    %1337 = vmatpush2.msra.mxu0 0.0
    %1338 = vmatprep.subr.mxu0 0.0
    %1339 = vmatpush2.msra.mxu0 0.0
    %1340 = vmatprep.subr.mxu0 0.0
    %1341 = vmatpush2.msra.mxu0 0.0
    %1342 = vmatprep.subr.mxu0 0.0
    %1343 = vmatpush2.msra.mxu0 0.0
    %1344 = vmatprep.subr.mxu0 0.0
    %1345 = vmatpush2.msra.mxu0 0.0
    %1346 = vmatprep.mubr.f32.mxu0 0.0
    %1347 = vmatmul.mubr.f32.gmra.mxu0 %v1280
    %v1348 = vpop.f32.mrf.mxu0
    %v1349 = vadd.f32 0.0, %v1348
    %v1350 = vpop.f32.mrf.mxu0
    %1351 = vdwg.mxu0
    %v1352 = vadd.f32 %v1276, %v1349
    %1354 = vrot.lane.b32.xlu0 %v1352, 64
    %v1355 = vpop.permute.xlu0 %1354
    %v1357 = vsel %vm42, %v1352, %v1355
    %v1358 = vxor.u32 %v1357, 2147483648
    %v1359 = vmul.f32 %v1358, 1.442695
    %v1360 = vpow.pop %v1359
    %v1361 = vadd.f32 %v1360, 1.0
    %v1362 = vrcp.pop %v1361
    %v1363 = vmul.f32 1.0, %v1362
    %v1364 = vtanh.pop %v1357
    %v1365 = vmul.f32 %v1363, %v1272
    %1367 = vrot.lane.b32.xlu0 %v1364, 80
    %v1368 = vpop.permute.xlu0 %1367
    %v1370 = vmul.f32 %v1363, %v1368
    %1372 = vrot.lane.b32.xlu0 %v1370, 16
    %v1373 = vpop.permute.xlu0 %1372
    %v1375 = vadd.f32 %v1365, %v1373
    %v1376 = vtanh.pop %v1375
    %1378 = vrot.lane.b32.xlu0 %v1376, 16
    %v1379 = vpop.permute.xlu0 %1378
    %v1381 = vmul.f32 %v1363, %v1379
    %v1382 = vsel %vm42, 5, 2
    %vm1383 = vcmp.gt.s32.totalorder %v663, %v1382
    %v1384 = vsel %vm1383, 1, 0
    %1385 = vset.pattern.permute.xlu0 0
    %1386 = vperm.xlu0 %1385, %v1384
    %v1387 = vpop.permute.xlu0 %1386
    %vm1388 = vcmp.eq.s32.totalorder %v1387, 1
    %v1389 = vsel %vm1388, %v1381, %v1271
    %v1390 = vsel %vm1388, %v1375, %v1272
    %v1391 = vsel %vm1388, %v1381, 0.0
    %v1392 = vrot.slane %v645, 6
    %v1394 = vrot.slane %v650, 5
    %v1396 = vrot.slane %v645, 7
    %v1398 = vrot.slane %v650, 6
    %v1400 = vsel %vm659, %v1392, %v1394
    %v1401 = vsel %vm42, %v1400, %v1396
    %v1402 = vsel %vm662, %v1401, %v1398
    %1404 = vrot.lane.b32.xlu0 %v1389, 96
    %v1405 = vpop.permute.xlu0 %1404
    %v1406 = vsel %vm675, %v1405, 0
    %1408 = vmatprep.subr.mxu0 0.0
    %1409 = vmatpush1.msra.mxu0 0.0
    %1410 = vmatprep.subr.mxu0 0.0
    %1411 = vmatpush1.msra.mxu0 0.0
    %1412 = vmatprep.subr.mxu0 0.0
    %1413 = vmatpush1.msra.mxu0 0.0
    %1414 = vmatprep.subr.mxu0 0.0
    %1415 = vmatpush1.msra.mxu0 0.0
    %1416 = vmatprep.subr.mxu0 0.0
    %1417 = vmatpush1.msra.mxu0 0.0
    %1418 = vmatprep.subr.mxu0 0.0
    %1419 = vmatpush1.msra.mxu0 0.0
    %1420 = vmatprep.subr.mxu0 0.0
    %1421 = vmatpush1.msra.mxu0 0.0
    %1422 = vmatprep.subr.mxu0 0.0
    %1423 = vmatpush1.msra.mxu0 0.0
    %1424 = vmatprep.subr.mxu0 0.0
    %1425 = vmatpush1.msra.mxu0 0.0
    %1426 = vmatprep.subr.mxu0 0.0
    %1427 = vmatpush1.msra.mxu0 0.0
    %1428 = vmatprep.subr.mxu0 0.0
    %1429 = vmatpush1.msra.mxu0 0.0
    %1430 = vmatprep.subr.mxu0 0.0
    %1431 = vmatpush1.msra.mxu0 0.0
    %1432 = vmatprep.subr.mxu0 0.0
    %1433 = vmatpush1.msra.mxu0 0.0
    %1434 = vmatprep.subr.mxu0 0.0
    %1435 = vmatpush1.msra.mxu0 0.0
    %1436 = vmatprep.subr.mxu0 0.0
    %1437 = vmatpush1.msra.mxu0 %v654
    %1438 = vmatprep.subr.mxu0 0.0
    %1439 = vmatpush1.msra.mxu0 %v653
    %1440 = vmatprep.subr.mxu0 0.0
    %1441 = vmatpush2.msra.mxu0 0.0
    %1442 = vmatprep.subr.mxu0 0.0
    %1443 = vmatpush2.msra.mxu0 0.0
    %1444 = vmatprep.subr.mxu0 0.0
    %1445 = vmatpush2.msra.mxu0 0.0
    %1446 = vmatprep.subr.mxu0 0.0
    %1447 = vmatpush2.msra.mxu0 0.0
    %1448 = vmatprep.subr.mxu0 0.0
    %1449 = vmatpush2.msra.mxu0 0.0
    %1450 = vmatprep.subr.mxu0 0.0
    %1451 = vmatpush2.msra.mxu0 0.0
    %1452 = vmatprep.subr.mxu0 0.0
    %1453 = vmatpush2.msra.mxu0 0.0
    %1454 = vmatprep.subr.mxu0 0.0
    %1455 = vmatpush2.msra.mxu0 0.0
    %1456 = vmatprep.subr.mxu0 0.0
    %1457 = vmatpush2.msra.mxu0 0.0
    %1458 = vmatprep.subr.mxu0 0.0
    %1459 = vmatpush2.msra.mxu0 0.0
    %1460 = vmatprep.subr.mxu0 0.0
    %1461 = vmatpush2.msra.mxu0 0.0
    %1462 = vmatprep.subr.mxu0 0.0
    %1463 = vmatpush2.msra.mxu0 0.0
    %1464 = vmatprep.subr.mxu0 0.0
    %1465 = vmatpush2.msra.mxu0 0.0
    %1466 = vmatprep.subr.mxu0 0.0
    %1467 = vmatpush2.msra.mxu0 0.0
    %1468 = vmatprep.subr.mxu0 0.0
    %1469 = vmatpush2.msra.mxu0 0.0
    %1470 = vmatprep.subr.mxu0 0.0
    %1471 = vmatpush2.msra.mxu0 0.0
    %1472 = vmatprep.mubr.f32.mxu0 0.0
    %1473 = vmatmul.mubr.f32.gmra.mxu0 %v1406
    %v1474 = vpop.f32.mrf.mxu0
    %v1475 = vadd.f32 0.0, %v1474
    %v1476 = vpop.f32.mrf.mxu0
    %1477 = vdwg.mxu0
    %v1478 = vadd.f32 %v1402, %v1475
    %1480 = vrot.lane.b32.xlu0 %v1478, 64
    %v1481 = vpop.permute.xlu0 %1480
    %v1483 = vsel %vm42, %v1478, %v1481
    %v1484 = vxor.u32 %v1483, 2147483648
    %v1485 = vmul.f32 %v1484, 1.442695
    %v1486 = vpow.pop %v1485
    %v1487 = vadd.f32 %v1486, 1.0
    %v1488 = vrcp.pop %v1487
    %v1489 = vmul.f32 1.0, %v1488
    %v1490 = vtanh.pop %v1483
    %v1491 = vmul.f32 %v1489, %v1390
    %1493 = vrot.lane.b32.xlu0 %v1490, 80
    %v1494 = vpop.permute.xlu0 %1493
    %v1496 = vmul.f32 %v1489, %v1494
    %1498 = vrot.lane.b32.xlu0 %v1496, 16
    %v1499 = vpop.permute.xlu0 %1498
    %v1501 = vadd.f32 %v1491, %v1499
    %v1502 = vtanh.pop %v1501
    %1504 = vrot.lane.b32.xlu0 %v1502, 16
    %v1505 = vpop.permute.xlu0 %1504
    %v1507 = vmul.f32 %v1489, %v1505
    %v1508 = vsel %vm42, 6, 1
    %vm1509 = vcmp.gt.s32.totalorder %v663, %v1508
    %v1510 = vsel %vm1509, 1, 0
    %1511 = vset.pattern.permute.xlu0 0
    %1512 = vperm.xlu0 %1511, %v1510
    %v1513 = vpop.permute.xlu0 %1512
    %vm1514 = vcmp.eq.s32.totalorder %v1513, 1
    %v1515 = vsel %vm1514, %v1507, %v1389
    %v1516 = vsel %vm1514, %v1501, %v1390
    %v1517 = vsel %vm1514, %v1507, 0.0
    %v1518 = vsel %vm659, %v1396, %v1398
    %v1519 = vsel %vm42, %v1518, %v1392
    %v1520 = vsel %vm662, %v1519, %v1394
    %1522 = vrot.lane.b32.xlu0 %v1515, 96
    %v1523 = vpop.permute.xlu0 %1522
    %v1524 = vsel %vm675, %v1523, 0
    %1526 = vmatprep.subr.mxu0 0.0
    %1527 = vmatpush1.msra.mxu0 0.0
    %1528 = vmatprep.subr.mxu0 0.0
    %1529 = vmatpush1.msra.mxu0 0.0
    %1530 = vmatprep.subr.mxu0 0.0
    %1531 = vmatpush1.msra.mxu0 0.0
    %1532 = vmatprep.subr.mxu0 0.0
    %1533 = vmatpush1.msra.mxu0 0.0
    %1534 = vmatprep.subr.mxu0 0.0
    %1535 = vmatpush1.msra.mxu0 0.0
    %1536 = vmatprep.subr.mxu0 0.0
    %1537 = vmatpush1.msra.mxu0 0.0
    %1538 = vmatprep.subr.mxu0 0.0
    %1539 = vmatpush1.msra.mxu0 0.0
    %1540 = vmatprep.subr.mxu0 0.0
    %1541 = vmatpush1.msra.mxu0 0.0
    %1542 = vmatprep.subr.mxu0 0.0
    %1543 = vmatpush1.msra.mxu0 0.0
    %1544 = vmatprep.subr.mxu0 0.0
    %1545 = vmatpush1.msra.mxu0 0.0
    %1546 = vmatprep.subr.mxu0 0.0
    %1547 = vmatpush1.msra.mxu0 0.0
    %1548 = vmatprep.subr.mxu0 0.0
    %1549 = vmatpush1.msra.mxu0 0.0
    %1550 = vmatprep.subr.mxu0 0.0
    %1551 = vmatpush1.msra.mxu0 0.0
    %1552 = vmatprep.subr.mxu0 0.0
    %1553 = vmatpush1.msra.mxu0 0.0
    %1554 = vmatprep.subr.mxu0 0.0
    %1555 = vmatpush1.msra.mxu0 %v654
    %1556 = vmatprep.subr.mxu0 0.0
    %1557 = vmatpush1.msra.mxu0 %v653
    %1558 = vmatprep.subr.mxu0 0.0
    %1559 = vmatpush2.msra.mxu0 0.0
    %1560 = vmatprep.subr.mxu0 0.0
    %1561 = vmatpush2.msra.mxu0 0.0
    %1562 = vmatprep.subr.mxu0 0.0
    %1563 = vmatpush2.msra.mxu0 0.0
    %1564 = vmatprep.subr.mxu0 0.0
    %1565 = vmatpush2.msra.mxu0 0.0
    %1566 = vmatprep.subr.mxu0 0.0
    %1567 = vmatpush2.msra.mxu0 0.0
    %1568 = vmatprep.subr.mxu0 0.0
    %1569 = vmatpush2.msra.mxu0 0.0
    %1570 = vmatprep.subr.mxu0 0.0
    %1571 = vmatpush2.msra.mxu0 0.0
    %1572 = vmatprep.subr.mxu0 0.0
    %1573 = vmatpush2.msra.mxu0 0.0
    %1574 = vmatprep.subr.mxu0 0.0
    %1575 = vmatpush2.msra.mxu0 0.0
    %1576 = vmatprep.subr.mxu0 0.0
    %1577 = vmatpush2.msra.mxu0 0.0
    %1578 = vmatprep.subr.mxu0 0.0
    %1579 = vmatpush2.msra.mxu0 0.0
    %1580 = vmatprep.subr.mxu0 0.0
    %1581 = vmatpush2.msra.mxu0 0.0
    %1582 = vmatprep.subr.mxu0 0.0
    %1583 = vmatpush2.msra.mxu0 0.0
    %1584 = vmatprep.subr.mxu0 0.0
    %1585 = vmatpush2.msra.mxu0 0.0
    %1586 = vmatprep.subr.mxu0 0.0
    %1587 = vmatpush2.msra.mxu0 0.0
    %1588 = vmatprep.subr.mxu0 0.0
    %1589 = vmatpush2.msra.mxu0 0.0
    %1590 = vmatprep.mubr.f32.mxu0 0.0
    %1591 = vmatmul.mubr.f32.gmra.mxu0 %v1524
    %v1592 = vpop.f32.mrf.mxu0
    %v1593 = vadd.f32 0.0, %v1592
    %v1594 = vpop.f32.mrf.mxu0
    %1595 = vdwg.mxu0
    %v1596 = vadd.f32 %v1520, %v1593
    %1598 = vrot.lane.b32.xlu0 %v1596, 64
    %v1599 = vpop.permute.xlu0 %1598
    %v1601 = vsel %vm42, %v1596, %v1599
    %v1602 = vxor.u32 %v1601, 2147483648
    %v1603 = vmul.f32 %v1602, 1.442695
    %v1604 = vpow.pop %v1603
    %v1605 = vadd.f32 %v1604, 1.0
    %v1606 = vrcp.pop %v1605
    %v1607 = vmul.f32 1.0, %v1606
    %v1608 = vtanh.pop %v1601
    %v1609 = vmul.f32 %v1607, %v1516
    %1611 = vrot.lane.b32.xlu0 %v1608, 80
    %v1612 = vpop.permute.xlu0 %1611
    %v1614 = vmul.f32 %v1607, %v1612
    %1616 = vrot.lane.b32.xlu0 %v1614, 16
    %v1617 = vpop.permute.xlu0 %1616
    %v1619 = vadd.f32 %v1609, %v1617
    %v1620 = vtanh.pop %v1619
    %1622 = vrot.lane.b32.xlu0 %v1620, 16
    %v1623 = vpop.permute.xlu0 %1622
    %v1625 = vmul.f32 %v1607, %v1623
    %v1626 = vsel %vm42, 7, 0
    %vm1627 = vcmp.gt.s32.totalorder %v663, %v1626
    %v1628 = vsel %vm1627, 1, 0
    %1629 = vset.pattern.permute.xlu0 0
    %1630 = vperm.xlu0 %1629, %v1628
    %v1631 = vpop.permute.xlu0 %1630
    %vm1632 = vcmp.eq.s32.totalorder %v1631, 1
    %v1633 = vsel %vm1632, %v1625, 0.0
    %v1635 = vrot.slane %v911, 7
    %v1638 = vrot.slane %v1037, 6
    %v1641 = vrot.slane %v1155, 5
    %v1644 = vrot.slane %v1273, 4
    %v1647 = vrot.slane %v1391, 3
    %v1650 = vrot.slane %v1517, 2
    %v1653 = vrot.slane %v1633, 1
    %v1655 = vsel %vm659, %v786, %v1635
    %v1656 = vsel %vm42, %v1655, %v1638
    %v1657 = vsel %vm662, %v1656, %v1641
    %v1658 = vsel %vm68, %v1657, %v1644
    %v1659 = vsel %vm61, %v1658, %v1647
    %v1660 = vsel %vm54, %v1659, %v1650
    %v1661 = vsel %vm47, %v1660, %v1653
    %v1662 = vrot.slane %v1633, 2
    %v1664 = vrot.slane %v1517, 1
    %v1666 = vrot.slane %v1273, 7
    %v1668 = vrot.slane %v1155, 6
    %v1670 = vrot.slane %v1037, 5
    %v1672 = vrot.slane %v911, 4
    %v1674 = vrot.slane %v786, 3
    %v1676 = vsel %vm659, %v1662, %v1664
    %v1677 = vsel %vm42, %v1676, %v1391
    %v1678 = vsel %vm662, %v1677, %v1666
    %v1679 = vsel %vm68, %v1678, %v1668
    %v1680 = vsel %vm61, %v1679, %v1670
    %v1681 = vsel %vm54, %v1680, %v1672
    %v1682 = vsel %vm47, %v1681, %v1674
    %1684 = vrot.lane.b32.xlu0 %v1661, 96
    %v1685 = vpop.permute.xlu0 %1684
    %1688 = vrot.lane.b32.xlu0 %v1682, 112
    %v1689 = vpop.permute.xlu0 %1688
    %v1691 = vsel %vm675, %v1685, %v1689
    %v1692 = vrot.slane %v786, 1
    %v1694 = vrot.slane %v1037, 7
    %v1696 = vrot.slane %v1273, 5
    %v1698 = vrot.slane %v1391, 4
    %v1700 = vrot.slane %v1517, 3
    %v1702 = vsel %vm659, %v1692, %v911
    %v1703 = vsel %vm42, %v1702, %v1694
    %v1704 = vsel %vm662, %v1703, %v1668
    %v1705 = vsel %vm68, %v1704, %v1696
    %v1706 = vsel %vm61, %v1705, %v1698
    %v1707 = vsel %vm54, %v1706, %v1700
    %v1708 = vsel %vm47, %v1707, %v1662
    %v1709 = vrot.slane %v1633, 3
    %v1711 = vrot.slane %v1391, 1
    %v1713 = vrot.slane %v1155, 7
    %v1715 = vrot.slane %v911, 5
    %v1717 = vrot.slane %v786, 4
    %v1719 = vsel %vm659, %v1709, %v1650
    %v1720 = vsel %vm42, %v1719, %v1711
    %v1721 = vsel %vm662, %v1720, %v1273
    %v1722 = vsel %vm68, %v1721, %v1713
    %v1723 = vsel %vm61, %v1722, %v1638
    %v1724 = vsel %vm54, %v1723, %v1715
    %v1725 = vsel %vm47, %v1724, %v1717
    %1727 = vrot.lane.b32.xlu0 %v1708, 96
    %v1728 = vpop.permute.xlu0 %1727
    %1731 = vrot.lane.b32.xlu0 %v1725, 112
    %v1732 = vpop.permute.xlu0 %1731
    %v1734 = vsel %vm675, %v1728, %v1732
    %v1735 = vld [vmem:[%s7] sm:$0xff]
    %v1736 = vld [vmem:[%s7 + $0x8] sm:$0xff]
    %v1737 = vld [vmem:[%s7 + $0x10] sm:$0xff]
    %v1738 = vld [vmem:[%s7 + $0x18] sm:$0xff]
    %v1739 = vld [vmem:[%s8] sm:$0x1]
    %v1741 = vlaneseq
    %v1742 = vshrl.u32 %v1741, 7
    %v1743 = vsub.s32 0, %v1742
    %v1744 = vrot.slane %v1739, %v1743
    %v1747 = vsel %vm72, %v1691, 0
    %v1750 = vsel %vm72, %v1734, 0
    %1752 = vmatprep.subr.mxu0 0.0
    %1753 = vmatpush1.msra.mxu0 0.0
    %1754 = vmatprep.subr.mxu0 0.0
    %1755 = vmatpush1.msra.mxu0 0.0
    %1756 = vmatprep.subr.mxu0 0.0
    %1757 = vmatpush1.msra.mxu0 0.0
    %1758 = vmatprep.subr.mxu0 0.0
    %1759 = vmatpush1.msra.mxu0 0.0
    %1760 = vmatprep.subr.mxu0 0.0
    %1761 = vmatpush1.msra.mxu0 0.0
    %1762 = vmatprep.subr.mxu0 0.0
    %1763 = vmatpush1.msra.mxu0 0.0
    %1764 = vmatprep.subr.mxu0 0.0
    %1765 = vmatpush1.msra.mxu0 0.0
    %1766 = vmatprep.subr.mxu0 0.0
    %1767 = vmatpush1.msra.mxu0 0.0
    %1768 = vmatprep.subr.mxu0 0.0
    %1769 = vmatpush1.msra.mxu0 0.0
    %1770 = vmatprep.subr.mxu0 0.0
    %1771 = vmatpush1.msra.mxu0 0.0
    %1772 = vmatprep.subr.mxu0 0.0
    %1773 = vmatpush1.msra.mxu0 0.0
    %1774 = vmatprep.subr.mxu0 0.0
    %1775 = vmatpush1.msra.mxu0 0.0
    %1776 = vmatprep.subr.mxu0 0.0
    %1777 = vmatpush1.msra.mxu0 %v1738
    %1778 = vmatprep.subr.mxu0 0.0
    %1779 = vmatpush1.msra.mxu0 %v1737
    %1780 = vmatprep.subr.mxu0 0.0
    %1781 = vmatpush1.msra.mxu0 %v1736
    %1782 = vmatprep.subr.mxu0 0.0
    %1783 = vmatpush1.msra.mxu0 %v1735
    %1784 = vmatprep.subr.mxu0 0.0
    %1785 = vmatpush2.msra.mxu0 0.0
    %1786 = vmatprep.subr.mxu0 0.0
    %1787 = vmatpush2.msra.mxu0 0.0
    %1788 = vmatprep.subr.mxu0 0.0
    %1789 = vmatpush2.msra.mxu0 0.0
    %1790 = vmatprep.subr.mxu0 0.0
    %1791 = vmatpush2.msra.mxu0 0.0
    %1792 = vmatprep.subr.mxu0 0.0
    %1793 = vmatpush2.msra.mxu0 0.0
    %1794 = vmatprep.subr.mxu0 0.0
    %1795 = vmatpush2.msra.mxu0 0.0
    %1796 = vmatprep.subr.mxu0 0.0
    %1797 = vmatpush2.msra.mxu0 0.0
    %1798 = vmatprep.subr.mxu0 0.0
    %1799 = vmatpush2.msra.mxu0 0.0
    %1800 = vmatprep.subr.mxu0 0.0
    %1801 = vmatpush2.msra.mxu0 0.0
    %1802 = vmatprep.subr.mxu0 0.0
    %1803 = vmatpush2.msra.mxu0 0.0
    %1804 = vmatprep.subr.mxu0 0.0
    %1805 = vmatpush2.msra.mxu0 0.0
    %1806 = vmatprep.subr.mxu0 0.0
    %1807 = vmatpush2.msra.mxu0 0.0
    %1808 = vmatprep.subr.mxu0 0.0
    %1809 = vmatpush2.msra.mxu0 0.0
    %1810 = vmatprep.subr.mxu0 0.0
    %1811 = vmatpush2.msra.mxu0 0.0
    %1812 = vmatprep.subr.mxu0 0.0
    %1813 = vmatpush2.msra.mxu0 0.0
    %1814 = vmatprep.subr.mxu0 0.0
    %1815 = vmatpush2.msra.mxu0 0.0
    %1816 = vmatprep.mubr.f32.mxu0 0.0
    %1817 = vmatmul.mubr.f32.gmra.mxu0 %v1747
    %v1818 = vpop.f32.mrf.mxu0
    %v1819 = vadd.f32 %v1744, %v1818
    %v1820 = vpop.f32.mrf.mxu0
    %1821 = vmatprep.mubr.f32.mxu0 0.0
    %1822 = vmatmul.mubr.f32.gmra.mxu0 %v1750
    %v1823 = vpop.f32.mrf.mxu0
    %v1824 = vadd.f32 %v1744, %v1823
    %v1825 = vpop.f32.mrf.mxu0
    %1826 = vdwg.mxu0
    %v1827 = vmax.f32 %v1819, 0.0
    %v1828 = vmax.f32 %v1824, 0.0
    %1829 = vst.msk [vmem:[#allocation4] sm:$0xff] %vm72, %v1827
    %1830 = vst.msk [vmem:[#allocation4 + $0x8] sm:$0xff] %vm72, %v1828
    // Predicated region
    $region34: #{tpu_custom_call.1} parent=1 // pred_check
      _
    $region35: #{tpu_custom_call.1} parent=1 // pred_check_branch
      %1832 = sbr.rel (0) target = $region37
    $region36: #{tpu_custom_call.1} parent=1 // pred_region
      %s1834 = ssub.s32 256, 256
      %1835 = vsyncadd [#allocation5], %s1834
      %s1836 = sshll.u32 [#allocation4], 4
      %s1837 = int_to_ptr.vmem [resolvable:$true] %s1836
      %1842 = dma.vmem_to_hbm [thread:$0]  %s1837, 256, %s9, [#allocation5], 128, 128, 8
    $region37: #{tpu_custom_call.1} parent=1 // pred_fallthru
      _
    // Predicated region
    $region38: #{tpu_custom_call.1} parent=1 // pred_check
      _
    $region39: #{tpu_custom_call.1} parent=1 // pred_check_branch
      %1844 = sbr.rel (0) target = $region41
    $region40: #{tpu_custom_call.1} parent=1 // pred_region
      %1845 = dma.done [#allocation5], 256
    $region41: #{tpu_custom_call.1} parent=1 // pred_fallthru
      _
    %1846 = vsyncpa [#allocation5], 1

</llo_original>
